<compile_context>
chip_gen: v7x
topology: tpu7x:2x2x1
jax: 0.10.0
libtpu: 0.0.40
codegen_flags: <defaults>
</compile_context>

<pallas_src>
import functools

import jax
import jax.numpy as jnp
import numpy as np
from jax.experimental import pallas as pl
from jax.experimental.pallas import tpu as pltpu


# ------------------------------------------------------------------- kernel --
def _rpe_fused_kernel(feats_ref, temb_ref, x_ref, wd_ref, bd_ref, wo_ref, bo_ref,
                      o_ref, *, mode, num_heads, frames, seq, head_dim):
    """One grid step = one batch element b.

    feats_ref : (1, T*S, 3)   distance features [log1p(+d), log1p(-d), d==0]
    temb_ref  : (1, T, C)     precomputed diffusion-time embedding
    x_ref     : (1, H, T, D, F) for mode=='qk'  /  (1, H, T, D, S) for mode=='v'
    o_ref     : (1, H, T, D, S) for mode=='qk'  /  (1, H, T, D, F) for mode=='v'
    """
    H, T, S, F = num_heads, frames, seq, head_dim
    C = wo_ref.shape[0]

    # ---- RPENet for ALL heads at once (R never touches HBM) ------------------
    feats = feats_ref[0]                                                   # (T*S, 3) f32
    emb = jnp.dot(feats, wd_ref[...],
                  preferred_element_type=jnp.float32) + bd_ref[...]       # (T*S, C)
    emb = emb.reshape(T, S, C) + temb_ref[0][:, None, :]                   # (T, S, C)
    act = emb * jax.nn.sigmoid(emb)                                        # SiLU (EUP), f32
    # out projection for all heads in one lane-saturated (T*S,C)@(C,C) matmul.
    r_all = jnp.dot(act.reshape(T * S, C), wo_ref[...],
                    preferred_element_type=jnp.float32) + bo_ref[...]      # (T*S, C)

    # ---- x . R contraction: t-batched dot_general, one per head --------------
    for h in range(H):                                   # static unroll; H is small
        r_h = r_all[:, h * F:(h + 1) * F].reshape(T, S, F)                 # (T, S, F)
        x_h = x_ref[0, h].astype(jnp.float32)                              # (T, D, L)
        if mode == "qk":
            # out[t, d, s] = sum_f qk[t, d, f] * R[t, s, f]
            res = jnp.einsum("tdf,tsf->tds", x_h, r_h,
                             preferred_element_type=jnp.float32)           # (T, D, S)
        else:
            # out[t, d, f] = sum_s attn[t, d, s] * R[t, s, f]
            res = jnp.einsum("tds,tsf->tdf", x_h, r_h,
                             preferred_element_type=jnp.float32)           # (T, D, F)
        o_ref[0, h] = res.astype(o_ref.dtype)


# ------------------------------------------------------------------ wrapper --
def rpe_forward(x, pairwise_distances, temb, params, mode):
    """Fused RPE forward (use_rpe_net=True path).

    mode=='qk': x = qk   (B,D,H,T,F) -> einsum('bdhtf,btshf->bdhts', qk, R)
    mode=='v' : x = attn (B,D,H,T,S) -> einsum('bdhts,btshf->bdhtf', attn, R)
    with R = RPENet(temb, pairwise_distances), computed in-kernel (never in HBM).
    """
    if mode not in ("qk", "v"):
        raise ValueError(f"Unexpected RPE attention mode: {mode}")
    # TODO(synk): use_rpe_net=False path (signed bucket-id computation + lookup-table
    # gather) is not implemented.
    B, D, H, T, L = x.shape
    S = pairwise_distances.shape[-1]
    C = params["w_out"].shape[0]
    F = C // H
    out_last = S if mode == "qk" else F

    # Tiny wrapper-side precompute: distance features (integer-valued distances,
    # so the ==0 float compare is exact) and the diffusion-time embedding.
    rd = pairwise_distances.astype(jnp.float32)
    feats = jnp.stack(
        [jnp.log1p(jnp.maximum(rd, 0.0)),
         jnp.log1p(jnp.maximum(-rd, 0.0)),
         (rd == 0.0).astype(jnp.float32)], axis=-1).reshape(B, T * S, 3)
    emb_time = (jnp.dot(temb.astype(jnp.float32), params["w_time"])
                + params["b_time"])                                        # (B, T, C)

    # Relayout the big tensor so the kernel reads/writes dense (T, D, last) slabs
    # per head.  (In production the attention producer should emit this layout.)
    x_r = jnp.transpose(x, (0, 2, 3, 1, 4))                                # (B,H,T,D,L)

    isz = x.dtype.itemsize
    cost = pl.CostEstimate(
        flops=int(2 * B * T * S * (3 * C + C * C) + 2 * B * H * T * D * F * S),
        transcendentals=int(B * T * S * C),
        bytes_accessed=int(B * T * S * 3 * 4 + B * T * C * 4
                           + B * H * T * D * L * isz
                           + B * H * T * D * out_last * isz
                           + (3 * C + C + C * C + C) * 4),
    )

    kernel = functools.partial(_rpe_fused_kernel, mode=mode, num_heads=H,
                               frames=T, seq=S, head_dim=F)
    out = pl.pallas_call(
        kernel,
        out_shape=jax.ShapeDtypeStruct((B, H, T, D, out_last), x.dtype),
        grid=(B,),
        in_specs=[
            pl.BlockSpec((1, T * S, 3), lambda b: (b, 0, 0)),            # dist feats
            pl.BlockSpec((1, T, C), lambda b: (b, 0, 0)),                # time emb
            pl.BlockSpec((1, H, T, D, L), lambda b: (b, 0, 0, 0, 0)),    # qk / attn
            pl.BlockSpec((3, C), lambda b: (0, 0)),                      # w_dist
            pl.BlockSpec((1, C), lambda b: (0, 0)),                      # b_dist
            pl.BlockSpec((C, C), lambda b: (0, 0)),                      # w_out
            pl.BlockSpec((1, C), lambda b: (0, 0)),                      # b_out
        ],
        out_specs=pl.BlockSpec((1, H, T, D, out_last),
                               lambda b: (b, 0, 0, 0, 0)),
        compiler_params=pltpu.CompilerParams(
            dimension_semantics=("parallel",),
            vmem_limit_bytes=32 * 1024 * 1024),
        cost_estimate=cost,
    )(feats, emb_time, x_r,
      params["w_dist"], params["b_dist"], params["w_out"], params["b_out"])

    # Back to the module's (B, D, H, T, out_last) layout.
    return jnp.transpose(out, (0, 3, 1, 2, 4))


# ---------------------------------------------------------------- reference --
HI = jax.lax.Precision.HIGHEST


def rpe_net_ref(temb, rd, params):
    rd = rd.astype(jnp.float32)
    pos = jnp.log1p(jnp.maximum(rd, 0.0))
    neg = jnp.log1p(jnp.maximum(-rd, 0.0))
    zer = (rd == 0).astype(jnp.float32)
    feats = jnp.stack([pos, neg, zer], axis=-1)                           # (B,T,S,3)
    emb_dist = jnp.einsum("btsk,kc->btsc", feats, params["w_dist"],
                          precision=HI) + params["b_dist"]
    emb_time = jnp.einsum("bte,ec->btc", temb, params["w_time"],
                          precision=HI) + params["b_time"]
    emb = emb_time[:, :, None, :] + emb_dist
    act = emb * jax.nn.sigmoid(emb)
    return jnp.einsum("btsc,cd->btsd", act, params["w_out"],
                      precision=HI) + params["b_out"]


def forward_qk_ref(qk, rd, temb, params, H, F):
    R = rpe_net_ref(temb, rd, params).reshape(*rd.shape, H, F)
    return jnp.einsum("bdhtf,btshf->bdhts", qk, R, precision=HI)


def forward_v_ref(attn, rd, temb, params, H, F):
    R = rpe_net_ref(temb, rd, params).reshape(*rd.shape, H, F)
    return jnp.einsum("bdhts,btshf->bdhtf", attn, R, precision=HI)


# --------------------------------------------------------------------- main --
if __name__ == "__main__":
    B, D, H, F, T, E = 2, 4, 2, 16, 8, 32    # batch, spatial, heads, head_dim, frames, temb
    C = H * F
    S = T

    key = jax.random.PRNGKey(0)
    keys = jax.random.split(key, 9)
    # NOTE: the PyTorch module zero-inits the `out` linear; we use a nonzero
    # deterministic init so the numerical check is meaningful.
    params = {
        "w_dist": 0.1 * jax.random.normal(keys[0], (3, C), jnp.float32),
        "b_dist": 0.1 * jax.random.normal(keys[1], (1, C), jnp.float32),
        "w_time": 0.1 * jax.random.normal(keys[2], (E, C), jnp.float32),
        "b_time": 0.1 * jax.random.normal(keys[3], (1, C), jnp.float32),
        "w_out": 0.1 * jax.random.normal(keys[4], (C, C), jnp.float32),
        "b_out": 0.1 * jax.random.normal(keys[5], (1, C), jnp.float32),
    }
    qk = jax.random.normal(keys[6], (B, D, H, T, F), jnp.float32)
    attn = jax.random.normal(keys[7], (B, D, H, T, S), jnp.float32)
    temb = jax.random.normal(keys[8], (B, T, E), jnp.float32)

    idx = jnp.arange(T, dtype=jnp.int32)
    rd = jnp.broadcast_to(idx[None, :, None] - idx[None, None, :], (B, T, T))

    out_qk = jax.block_until_ready(rpe_forward(qk, rd, temb, params, mode="qk"))
    out_v = jax.block_until_ready(rpe_forward(attn, rd, temb, params, mode="v"))

    ref_qk = forward_qk_ref(qk, rd, temb, params, H, F)
    ref_v = forward_v_ref(attn, rd, temb, params, H, F)

    # Kernel matmuls use default (one-pass bf16) MXU precision per perf guidance,
    # reference uses HIGHEST -> tolerance reflects bf16 rounding over chained dots.
    np.testing.assert_allclose(np.asarray(out_qk), np.asarray(ref_qk),
                               rtol=5e-2, atol=5e-2)
    np.testing.assert_allclose(np.asarray(out_v), np.asarray(ref_v),
                               rtol=5e-2, atol=5e-2)
    print("KERNEL_OK")
</pallas_src>

<mosaic_0001>
module attributes {stable_mosaic.version = 11 : i64} {
  func.func @_rpe_fused_kernel(%arg0: i32, %arg1: memref<1x64x3xf32, #tpu.memory_space<vmem>>, %arg2: memref<1x8x32xf32, #tpu.memory_space<vmem>>, %arg3: memref<1x2x8x4x16xf32, #tpu.memory_space<vmem>>, %arg4: memref<3x32xf32, #tpu.memory_space<vmem>>, %arg5: memref<1x32xf32, #tpu.memory_space<vmem>>, %arg6: memref<32x32xf32, #tpu.memory_space<vmem>>, %arg7: memref<1x32xf32, #tpu.memory_space<vmem>>, %arg8: memref<1x2x8x4x8xf32, #tpu.memory_space<vmem>>) attributes {dimension_semantics = [#tpu.dimension_semantics<parallel>], iteration_bounds = array<i64: 2>, scalar_prefetch = 0 : i64, scratch_operands = 0 : i64, tpu.core_type = #tpu.core_type<tc>, window_params = [{transform_indices = @transform_0, window_bounds = array<i64: 1, 64, 3>}, {transform_indices = @transform_1, window_bounds = array<i64: 1, 8, 32>}, {transform_indices = @transform_2, window_bounds = array<i64: 1, 2, 8, 4, 16>}, {pipeline_mode = #tpu.pipeline_mode<synchronous>, transform_indices = @transform_3, window_bounds = array<i64: 3, 32>}, {pipeline_mode = #tpu.pipeline_mode<synchronous>, transform_indices = @transform_4, window_bounds = array<i64: 1, 32>}, {pipeline_mode = #tpu.pipeline_mode<synchronous>, transform_indices = @transform_5, window_bounds = array<i64: 32, 32>}, {pipeline_mode = #tpu.pipeline_mode<synchronous>, transform_indices = @transform_6, window_bounds = array<i64: 1, 32>}, {transform_indices = @transform_7, window_bounds = array<i64: 1, 2, 8, 4, 8>}]} {
    %c0 = arith.constant 0 : index
    %c0_0 = arith.constant 0 : index
    %c0_1 = arith.constant 0 : index
    %0 = vector.load %arg1[%c0, %c0_0, %c0_1] : memref<1x64x3xf32, #tpu.memory_space<vmem>>, vector<1x64x3xf32>
    %1 = vector.shape_cast %0 : vector<1x64x3xf32> to vector<64x3xf32>
    %c0_2 = arith.constant 0 : index
    %c0_3 = arith.constant 0 : index
    %2 = vector.load %arg4[%c0_2, %c0_3] : memref<3x32xf32, #tpu.memory_space<vmem>>, vector<3x32xf32>
    %cst = arith.constant dense<0.000000e+00> : vector<64x32xf32>
    %3 = tpu.matmul %1, %2, %cst {dimension_numbers = #tpu.dot_dimension_numbers<[1], [0], [0], [1], [0, 0, 1, 1], [], []>} : vector<64x3xf32>, vector<3x32xf32>, vector<64x32xf32> -> vector<64x32xf32>
    %c0_4 = arith.constant 0 : index
    %c0_5 = arith.constant 0 : index
    %4 = vector.load %arg5[%c0_4, %c0_5] : memref<1x32xf32, #tpu.memory_space<vmem>>, vector<1x32xf32>
    %5 = vector.broadcast %4 : vector<1x32xf32> to vector<64x32xf32>
    %6 = arith.addf %3, %5 : vector<64x32xf32>
    %7 = vector.shape_cast %6 : vector<64x32xf32> to vector<8x8x32xf32>
    %c0_6 = arith.constant 0 : index
    %c0_7 = arith.constant 0 : index
    %c0_8 = arith.constant 0 : index
    %8 = vector.load %arg2[%c0_6, %c0_7, %c0_8] : memref<1x8x32xf32, #tpu.memory_space<vmem>>, vector<1x8x32xf32>
    %9 = vector.shape_cast %8 : vector<1x8x32xf32> to vector<8x32xf32>
    %10 = vector.shape_cast %9 : vector<8x32xf32> to vector<8x1x32xf32>
    %11 = vector.broadcast %10 : vector<8x1x32xf32> to vector<8x8x32xf32>
    %12 = arith.addf %7, %11 : vector<8x8x32xf32>
    %13 = arith.negf %12 : vector<8x8x32xf32>
    %14 = math.exp %13 : vector<8x8x32xf32>
    %cst_9 = arith.constant 1.000000e+00 : f32
    %15 = vector.broadcast %cst_9 : f32 to vector<8x8x32xf32>
    %16 = arith.addf %15, %14 : vector<8x8x32xf32>
    %17 = arith.divf %15, %16 : vector<8x8x32xf32>
    %18 = arith.mulf %12, %17 : vector<8x8x32xf32>
    %19 = vector.shape_cast %18 : vector<8x8x32xf32> to vector<64x32xf32>
    %c0_10 = arith.constant 0 : index
    %c0_11 = arith.constant 0 : index
    %20 = vector.load %arg6[%c0_10, %c0_11] : memref<32x32xf32, #tpu.memory_space<vmem>>, vector<32x32xf32>
    %cst_12 = arith.constant dense<0.000000e+00> : vector<64x32xf32>
    %21 = tpu.matmul %19, %20, %cst_12 {dimension_numbers = #tpu.dot_dimension_numbers<[1], [0], [0], [1], [0, 0, 1, 1], [], []>} : vector<64x32xf32>, vector<32x32xf32>, vector<64x32xf32> -> vector<64x32xf32>
    %c0_13 = arith.constant 0 : index
    %c0_14 = arith.constant 0 : index
    %22 = vector.load %arg7[%c0_13, %c0_14] : memref<1x32xf32, #tpu.memory_space<vmem>>, vector<1x32xf32>
    %23 = vector.broadcast %22 : vector<1x32xf32> to vector<64x32xf32>
    %24 = arith.addf %21, %23 : vector<64x32xf32>
    %25 = vector.extract_strided_slice %24 {offsets = [0, 0], sizes = [64, 16], strides = [1, 1]} : vector<64x32xf32> to vector<64x16xf32>
    %26 = vector.shape_cast %25 : vector<64x16xf32> to vector<8x8x16xf32>
    %c0_15 = arith.constant 0 : index
    %c0_16 = arith.constant 0 : index
    %c0_17 = arith.constant 0 : index
    %c0_18 = arith.constant 0 : index
    %c0_19 = arith.constant 0 : index
    %27 = vector.load %arg3[%c0_15, %c0_16, %c0_17, %c0_18, %c0_19] : memref<1x2x8x4x16xf32, #tpu.memory_space<vmem>>, vector<1x1x8x4x16xf32>
    %28 = vector.shape_cast %27 : vector<1x1x8x4x16xf32> to vector<8x4x16xf32>
    "tpu.trace_start"() <{level = 10 : i32, message = "tdf,tsf->tds"}> : () -> ()
    %cst_20 = arith.constant dense<0.000000e+00> : vector<8x4x8xf32>
    %29 = tpu.matmul %28, %26, %cst_20 {dimension_numbers = #tpu.dot_dimension_numbers<[2], [2], [1], [1], [0, 0, 0, 1, 1, 1], [0], [0]>} : vector<8x4x16xf32>, vector<8x8x16xf32>, vector<8x4x8xf32> -> vector<8x4x8xf32>
    "tpu.trace_stop"() : () -> ()
    %c0_21 = arith.constant 0 : index
    %c0_22 = arith.constant 0 : index
    %c0_23 = arith.constant 0 : index
    %c0_24 = arith.constant 0 : index
    %c0_25 = arith.constant 0 : index
    %30 = vector.load %arg8[%c0_21, %c0_22, %c0_23, %c0_24, %c0_25] : memref<1x2x8x4x8xf32, #tpu.memory_space<vmem>>, vector<1x1x8x4x8xf32>
    %31 = vector.shape_cast %30 : vector<1x1x8x4x8xf32> to vector<8x4x8xf32>
    %32 = vector.shape_cast %29 : vector<8x4x8xf32> to vector<1x1x8x4x8xf32>
    tpu.vector_store %arg8[%c0_21, %c0_22, %c0_23, %c0_24, %c0_25], %32 {strides = array<i32>} : memref<1x2x8x4x8xf32, #tpu.memory_space<vmem>>, vector<1x1x8x4x8xf32>,
    %33 = vector.extract_strided_slice %24 {offsets = [0, 16], sizes = [64, 16], strides = [1, 1]} : vector<64x32xf32> to vector<64x16xf32>
    %34 = vector.shape_cast %33 : vector<64x16xf32> to vector<8x8x16xf32>
    %c0_26 = arith.constant 0 : index
    %c1 = arith.constant 1 : index
    %c0_27 = arith.constant 0 : index
    %c0_28 = arith.constant 0 : index
    %c0_29 = arith.constant 0 : index
    %35 = vector.load %arg3[%c0_26, %c1, %c0_27, %c0_28, %c0_29] : memref<1x2x8x4x16xf32, #tpu.memory_space<vmem>>, vector<1x1x8x4x16xf32>
    %36 = vector.shape_cast %35 : vector<1x1x8x4x16xf32> to vector<8x4x16xf32>
    "tpu.trace_start"() <{level = 10 : i32, message = "tdf,tsf->tds"}> : () -> ()
    %cst_30 = arith.constant dense<0.000000e+00> : vector<8x4x8xf32>
    %37 = tpu.matmul %36, %34, %cst_30 {dimension_numbers = #tpu.dot_dimension_numbers<[2], [2], [1], [1], [0, 0, 0, 1, 1, 1], [0], [0]>} : vector<8x4x16xf32>, vector<8x8x16xf32>, vector<8x4x8xf32> -> vector<8x4x8xf32>
    "tpu.trace_stop"() : () -> ()
    %c0_31 = arith.constant 0 : index
    %c1_32 = arith.constant 1 : index
    %c0_33 = arith.constant 0 : index
    %c0_34 = arith.constant 0 : index
    %c0_35 = arith.constant 0 : index
    %38 = vector.load %arg8[%c0_31, %c1_32, %c0_33, %c0_34, %c0_35] : memref<1x2x8x4x8xf32, #tpu.memory_space<vmem>>, vector<1x1x8x4x8xf32>
    %39 = vector.shape_cast %38 : vector<1x1x8x4x8xf32> to vector<8x4x8xf32>
    %40 = vector.shape_cast %37 : vector<8x4x8xf32> to vector<1x1x8x4x8xf32>
    tpu.vector_store %arg8[%c0_31, %c1_32, %c0_33, %c0_34, %c0_35], %40 {strides = array<i32>} : memref<1x2x8x4x8xf32, #tpu.memory_space<vmem>>, vector<1x1x8x4x8xf32>,
    return
  }
  func.func @transform_0(%arg0: i32) -> (i32, i32, i32) {
    %c0_i32 = arith.constant 0 : i32
    %c0_i32_0 = arith.constant 0 : i32
    %c0_i32_1 = arith.constant 0 : i32
    return %arg0, %c0_i32, %c0_i32_0 : i32, i32, i32
  }
  func.func @transform_1(%arg0: i32) -> (i32, i32, i32) {
    %c0_i32 = arith.constant 0 : i32
    %c0_i32_0 = arith.constant 0 : i32
    %c0_i32_1 = arith.constant 0 : i32
    return %arg0, %c0_i32, %c0_i32_0 : i32, i32, i32
  }
  func.func @transform_2(%arg0: i32) -> (i32, i32, i32, i32, i32) {
    %c0_i32 = arith.constant 0 : i32
    %c0_i32_0 = arith.constant 0 : i32
    %c0_i32_1 = arith.constant 0 : i32
    %c0_i32_2 = arith.constant 0 : i32
    %c0_i32_3 = arith.constant 0 : i32
    return %arg0, %c0_i32, %c0_i32_0, %c0_i32_1, %c0_i32_2 : i32, i32, i32, i32, i32
  }
  func.func @transform_3(%arg0: i32) -> (i32, i32) {
    %c0_i32 = arith.constant 0 : i32
    %c0_i32_0 = arith.constant 0 : i32
    %c0_i32_1 = arith.constant 0 : i32
    return %c0_i32, %c0_i32_0 : i32, i32
  }
  func.func @transform_4(%arg0: i32) -> (i32, i32) {
    %c0_i32 = arith.constant 0 : i32
    %c0_i32_0 = arith.constant 0 : i32
    %c0_i32_1 = arith.constant 0 : i32
    return %c0_i32, %c0_i32_0 : i32, i32
  }
  func.func @transform_5(%arg0: i32) -> (i32, i32) {
    %c0_i32 = arith.constant 0 : i32
    %c0_i32_0 = arith.constant 0 : i32
    %c0_i32_1 = arith.constant 0 : i32
    return %c0_i32, %c0_i32_0 : i32, i32
  }
  func.func @transform_6(%arg0: i32) -> (i32, i32) {
    %c0_i32 = arith.constant 0 : i32
    %c0_i32_0 = arith.constant 0 : i32
    %c0_i32_1 = arith.constant 0 : i32
    return %c0_i32, %c0_i32_0 : i32, i32
  }
  func.func @transform_7(%arg0: i32) -> (i32, i32, i32, i32, i32) {
    %c0_i32 = arith.constant 0 : i32
    %c0_i32_0 = arith.constant 0 : i32
    %c0_i32_1 = arith.constant 0 : i32
    %c0_i32_2 = arith.constant 0 : i32
    %c0_i32_3 = arith.constant 0 : i32
    return %arg0, %c0_i32, %c0_i32_0, %c0_i32_1, %c0_i32_2 : i32, i32, i32, i32, i32
  }
}

</mosaic_0001>

<llo_original>
// kernel: tpu_custom_call.1
$region0: #{tpu_custom_call.1}
  #allocation0 [shape = 'u32[]', space=smem, size = 0x4, offset = 0x4, fixed_abs, tag = 'smem constant byte address 0x4 - core index']
  #allocation1 [shape = 'u32[144,128]{1,0:T(1,128)}', space=vmem, size = 0x12000, scoped, tag = 'internal scratch']
  %s0 = inlined_call_operand.vmem [shape: f32[2,64,3], index: 0, kind: input, shape index: {}]
  %s1 = inlined_call_operand.hbm [shape: f32[2,8,32], index: 1, kind: input, shape index: {}]
  %s2 = inlined_call_operand.vmem [shape: f32[2,2,8,4,16], index: 2, kind: input, shape index: {}]
  %s3 = inlined_call_operand.vmem [shape: f32[3,32], index: 3, kind: input, shape index: {}]
  %s4 = inlined_call_operand.vmem [shape: f32[1,32], index: 4, kind: input, shape index: {}]
  %s5 = inlined_call_operand.hbm [shape: f32[32,32], index: 5, kind: input, shape index: {}]
  %s6 = inlined_call_operand.vmem [shape: f32[1,32], index: 6, kind: input, shape index: {}]
  %s7 = inlined_call_operand.hbm [shape: f32[2,2,8,4,8], index: 7, kind: output, shape index: {}]
  %s8 = sld [smem:[#allocation0]]
  $region69: #{tpu_custom_call.1} parent=0
    _
  %s10 = ssub.s32 1, %s8
  %s11 = scalar_select 0, %s10, %s8
  $region1: #{tpu_custom_call.1} parent=0
    #allocation2 [shape = 'u8[8192]{0}', space=vmem, size = 0x2000, scoped, tag = 'input window, operand 1']
    #allocation3 [shape = 's32[2]{0}', space=sflag, size = 0x8, scoped, tag = 'scoped memory for tpu_custom_call.1']
    #allocation4 [shape = 's32[2]{0}', space=sflag, size = 0x8, scoped, tag = 'scoped memory for tpu_custom_call.1']
    #allocation5 [shape = 'u8[16384]{0}', space=vmem, size = 0x4000, scoped, tag = 'input window, operand 5, single buffered']
    #allocation6 [shape = 's32[1]{0}', space=sflag, size = 0x4, scoped, tag = 'scoped memory for tpu_custom_call.1']
    #allocation7 [shape = 'u8[65536]{0}', space=vmem, size = 0x10000, scoped, tag = 'output window, operand 0']
    %12 = vsyncpa [#allocation3], 0
    %s13 = scalar_lea.sflag [#allocation3], 1
    %14 = vsyncpa %s13, 0
    %15 = vsyncpa [#allocation6], 0
    %16 = vsyncpa [#allocation4], 0
    %s17 = scalar_lea.sflag [#allocation4], 1
    %18 = vsyncpa %s17, 0
    loop: start=0, step=1, limit=4
    $region2: #{tpu_custom_call.1} parent=1 // loop_pre_header
      _
    $region3: #{tpu_custom_call.1} parent=1 // loop_header
      %s20 = sphi 0, %s24
      %p21 = scmp.ge.s32.totalorder %s20, 4
      %s30 = sphi 0, %s32
      %s33 = sphi 0, %s30
      %s34 = sphi 0, %s33
      %s50 = sphi 0, %s34
      %s56 = sphi 0, %s58
      %s59 = sphi 0, %s56
      %s60 = sphi 0, %s59
      %s76 = sphi 0, %s60
      %s82 = sphi 0, %s84
      %s85 = sphi 0, %s82
      %s86 = sphi 0, %s85
      %s102 = sphi 0, %s86
      %s106 = sphi 0, %s106
      %s108 = sphi 0, %s106
      %s109 = sphi 0, %s108
      %s123 = sphi 0, %s109
      %s127 = sphi 0, %s127
      %s129 = sphi 0, %s127
      %s130 = sphi 0, %s129
      %s144 = sphi 0, %s130
      %s148 = sphi 0, %s148
      %s150 = sphi 0, %s148
      %s151 = sphi 0, %s150
      %s165 = sphi 0, %s151
      %s169 = sphi 0, %s169
      %s171 = sphi 0, %s169
      %s172 = sphi 0, %s171
      %s186 = sphi 0, %s172
      %s192 = sphi 0, %s194
      %s195 = sphi 0, %s192
      %s196 = sphi 0, %s195
      %s212 = sphi 0, %s196
    $region4: #{tpu_custom_call.1} parent=1 // loop_header_branch
      %23 = sbr.rel (%p21) target = $region8
    $region5: #{tpu_custom_call.1} parent=1 // loop_body
      %s25 = ssub.s32 %s20, 1
      %s26 = ssub.s32 %s20, 2
      %s27 = sadd.s32 %s20, 1
      %s28 = ssub.s32 %s20, %s27
      %p29 = scmp.eq.s32.totalorder %s28, 0
      %s31 = sadd.s32 %s30, 1
      %s32 = scalar_select %p29, %s30, %s31
      %p35 = pneg %p29
      %p36 = scmp.eq.s32.totalorder %s20, 1
      %p37 = por %p35, %p36
      %p38 = scmp.ne.s32.totalorder %s30, %s33
      %p39 = scmp.eq.s32.totalorder %s20, 0
      %p40 = por %p38, %p39
      %p41 = scmp.ne.s32.totalorder %s30, %s33
      %p42 = scmp.eq.s32.totalorder %s25, 1
      %p43 = por %p41, %p42
      %p44 = scmp.ne.s32.totalorder %s33, %s34
      %p45 = scmp.eq.s32.totalorder %s25, 0
      %p46 = por %p44, %p45
      %p47 = scmp.ne.s32.totalorder %s33, %s34
      %p48 = scmp.eq.s32.totalorder %s26, 1
      %p49 = por %p47, %p48
      %p51 = scmp.ne.s32.totalorder %s34, %s50
      %p52 = scmp.eq.s32.totalorder %s26, 0
      %p53 = por %p51, %p52
      %s54 = ssub.s32 %s20, %s27
      %p55 = scmp.eq.s32.totalorder %s54, 0
      %s57 = sadd.s32 %s56, 1
      %s58 = scalar_select %p55, %s56, %s57
      %p61 = pneg %p55
      %p62 = scmp.eq.s32.totalorder %s20, 1
      %p63 = por %p61, %p62
      %p64 = scmp.ne.s32.totalorder %s56, %s59
      %p65 = scmp.eq.s32.totalorder %s20, 0
      %p66 = por %p64, %p65
      %p67 = scmp.ne.s32.totalorder %s56, %s59
      %p68 = scmp.eq.s32.totalorder %s25, 1
      %p69 = por %p67, %p68
      %p70 = scmp.ne.s32.totalorder %s59, %s60
      %p71 = scmp.eq.s32.totalorder %s25, 0
      %p72 = por %p70, %p71
      %p73 = scmp.ne.s32.totalorder %s59, %s60
      %p74 = scmp.eq.s32.totalorder %s26, 1
      %p75 = por %p73, %p74
      %p77 = scmp.ne.s32.totalorder %s60, %s76
      %p78 = scmp.eq.s32.totalorder %s26, 0
      %p79 = por %p77, %p78
      %s80 = ssub.s32 %s20, %s27
      %p81 = scmp.eq.s32.totalorder %s80, 0
      %s83 = sadd.s32 %s82, 1
      %s84 = scalar_select %p81, %s82, %s83
      %p87 = pneg %p81
      %p88 = scmp.eq.s32.totalorder %s20, 1
      %p89 = por %p87, %p88
      %p90 = scmp.ne.s32.totalorder %s82, %s85
      %p91 = scmp.eq.s32.totalorder %s20, 0
      %p92 = por %p90, %p91
      %p93 = scmp.ne.s32.totalorder %s82, %s85
      %p94 = scmp.eq.s32.totalorder %s25, 1
      %p95 = por %p93, %p94
      %p96 = scmp.ne.s32.totalorder %s85, %s86
      %p97 = scmp.eq.s32.totalorder %s25, 0
      %p98 = por %p96, %p97
      %p99 = scmp.ne.s32.totalorder %s85, %s86
      %p100 = scmp.eq.s32.totalorder %s26, 1
      %p101 = por %p99, %p100
      %p103 = scmp.ne.s32.totalorder %s86, %s102
      %p104 = scmp.eq.s32.totalorder %s26, 0
      %p105 = por %p103, %p104
      %s107 = sadd.s32 %s106, 1
      %p110 = scmp.eq.s32.totalorder %s20, 1
      %p111 = scmp.ne.s32.totalorder %s106, %s108
      %p112 = scmp.eq.s32.totalorder %s20, 0
      %p113 = por %p111, %p112
      %p114 = scmp.ne.s32.totalorder %s106, %s108
      %p115 = scmp.eq.s32.totalorder %s25, 1
      %p116 = por %p114, %p115
      %p117 = scmp.ne.s32.totalorder %s108, %s109
      %p118 = scmp.eq.s32.totalorder %s25, 0
      %p119 = por %p117, %p118
      %p120 = scmp.ne.s32.totalorder %s108, %s109
      %p121 = scmp.eq.s32.totalorder %s26, 1
      %p122 = por %p120, %p121
      %p124 = scmp.ne.s32.totalorder %s109, %s123
      %p125 = scmp.eq.s32.totalorder %s26, 0
      %p126 = por %p124, %p125
      %s128 = sadd.s32 %s127, 1
      %p131 = scmp.eq.s32.totalorder %s20, 1
      %p132 = scmp.ne.s32.totalorder %s127, %s129
      %p133 = scmp.eq.s32.totalorder %s20, 0
      %p134 = por %p132, %p133
      %p135 = scmp.ne.s32.totalorder %s127, %s129
      %p136 = scmp.eq.s32.totalorder %s25, 1
      %p137 = por %p135, %p136
      %p138 = scmp.ne.s32.totalorder %s129, %s130
      %p139 = scmp.eq.s32.totalorder %s25, 0
      %p140 = por %p138, %p139
      %p141 = scmp.ne.s32.totalorder %s129, %s130
      %p142 = scmp.eq.s32.totalorder %s26, 1
      %p143 = por %p141, %p142
      %p145 = scmp.ne.s32.totalorder %s130, %s144
      %p146 = scmp.eq.s32.totalorder %s26, 0
      %p147 = por %p145, %p146
      %s149 = sadd.s32 %s148, 1
      %p152 = scmp.eq.s32.totalorder %s20, 1
      %p153 = scmp.ne.s32.totalorder %s148, %s150
      %p154 = scmp.eq.s32.totalorder %s20, 0
      %p155 = por %p153, %p154
      %p156 = scmp.ne.s32.totalorder %s148, %s150
      %p157 = scmp.eq.s32.totalorder %s25, 1
      %p158 = por %p156, %p157
      %p159 = scmp.ne.s32.totalorder %s150, %s151
      %p160 = scmp.eq.s32.totalorder %s25, 0
      %p161 = por %p159, %p160
      %p162 = scmp.ne.s32.totalorder %s150, %s151
      %p163 = scmp.eq.s32.totalorder %s26, 1
      %p164 = por %p162, %p163
      %p166 = scmp.ne.s32.totalorder %s151, %s165
      %p167 = scmp.eq.s32.totalorder %s26, 0
      %p168 = por %p166, %p167
      %s170 = sadd.s32 %s169, 1
      %p173 = scmp.eq.s32.totalorder %s20, 1
      %p174 = scmp.ne.s32.totalorder %s169, %s171
      %p175 = scmp.eq.s32.totalorder %s20, 0
      %p176 = por %p174, %p175
      %p177 = scmp.ne.s32.totalorder %s169, %s171
      %p178 = scmp.eq.s32.totalorder %s25, 1
      %p179 = por %p177, %p178
      %p180 = scmp.ne.s32.totalorder %s171, %s172
      %p181 = scmp.eq.s32.totalorder %s25, 0
      %p182 = por %p180, %p181
      %p183 = scmp.ne.s32.totalorder %s171, %s172
      %p184 = scmp.eq.s32.totalorder %s26, 1
      %p185 = por %p183, %p184
      %p187 = scmp.ne.s32.totalorder %s172, %s186
      %p188 = scmp.eq.s32.totalorder %s26, 0
      %p189 = por %p187, %p188
      %s190 = ssub.s32 %s20, %s27
      %p191 = scmp.eq.s32.totalorder %s190, 0
      %s193 = sadd.s32 %s192, 1
      %s194 = scalar_select %p191, %s192, %s193
      %p197 = pneg %p191
      %p198 = scmp.eq.s32.totalorder %s20, 1
      %p199 = por %p197, %p198
      %p200 = scmp.ne.s32.totalorder %s192, %s195
      %p201 = scmp.eq.s32.totalorder %s20, 0
      %p202 = por %p200, %p201
      %p203 = scmp.ne.s32.totalorder %s192, %s195
      %p204 = scmp.eq.s32.totalorder %s25, 1
      %p205 = por %p203, %p204
      %p206 = scmp.ne.s32.totalorder %s195, %s196
      %p207 = scmp.eq.s32.totalorder %s25, 0
      %p208 = por %p206, %p207
      %p209 = scmp.ne.s32.totalorder %s195, %s196
      %p210 = scmp.eq.s32.totalorder %s26, 1
      %p211 = por %p209, %p210
      %p213 = scmp.ne.s32.totalorder %s196, %s212
      %p214 = scmp.eq.s32.totalorder %s26, 0
      %p215 = por %p213, %p214
      %p216 = scmp.le.s32.totalorder 1, %s20
      %p217 = scmp.lt.s32.totalorder %s20, 3
      %p218 = pnand %p216, %p217
      %p219 = pneg %p218
      // Predicated region
      $region9: #{tpu_custom_call.1} parent=5 // pred_check
        _
      $region10: #{tpu_custom_call.1} parent=5 // pred_check_branch
        %221 = sbr.rel (%p218) target = $region12
      $region11: #{tpu_custom_call.1} parent=5 // pred_region
        %s222 = ssub.s32 %s20, 1
        // Predicated region
        $region13: #{tpu_custom_call.1} parent=11 // pred_check
          %p223 = pneg %p119
        $region14: #{tpu_custom_call.1} parent=11 // pred_check_branch
          %225 = sbr.rel (%p223) target = $region16
        $region15: #{tpu_custom_call.1} parent=11 // pred_region
          _
        $region16: #{tpu_custom_call.1} parent=11 // pred_fallthru
          _
        // Predicated region
        $region17: #{tpu_custom_call.1} parent=11 // pred_check
          %p226 = pneg %p140
        $region18: #{tpu_custom_call.1} parent=11 // pred_check_branch
          %228 = sbr.rel (%p226) target = $region20
        $region19: #{tpu_custom_call.1} parent=11 // pred_region
          _
        $region20: #{tpu_custom_call.1} parent=11 // pred_fallthru
          _
        // Predicated region
        $region21: #{tpu_custom_call.1} parent=11 // pred_check
          %p229 = pneg %p161
        $region22: #{tpu_custom_call.1} parent=11 // pred_check_branch
          %231 = sbr.rel (%p229) target = $region24
        $region23: #{tpu_custom_call.1} parent=11 // pred_region
          %s233 = ssub.s32 512, 512
          %234 = vsyncadd [#allocation6], %s233
          %s235 = sshll.u32 [#allocation5], 4
          %s236 = int_to_ptr.vmem [resolvable:$true] %s235
          %241 = dma.hbm_to_vmem [thread:$0]  %s5, 512, %s236, [#allocation6], 128, 128, 8
        $region24: #{tpu_custom_call.1} parent=11 // pred_fallthru
          _
        // Predicated region
        $region25: #{tpu_custom_call.1} parent=11 // pred_check
          %p242 = pneg %p182
        $region26: #{tpu_custom_call.1} parent=11 // pred_check_branch
          %244 = sbr.rel (%p242) target = $region28
        $region27: #{tpu_custom_call.1} parent=11 // pred_region
          _
        $region28: #{tpu_custom_call.1} parent=11 // pred_fallthru
          _
      $region12: #{tpu_custom_call.1} parent=5 // pred_fallthru
        _
      %p245 = scmp.lt.s32.totalorder %s20, 2
      // Predicated region
      $region29: #{tpu_custom_call.1} parent=5 // pred_check
        %p246 = pneg %p245
      $region30: #{tpu_custom_call.1} parent=5 // pred_check_branch
        %248 = sbr.rel (%p246) target = $region32
      $region31: #{tpu_custom_call.1} parent=5 // pred_region
        // Predicated region
        $region33: #{tpu_custom_call.1} parent=31 // pred_check
          %p249 = pneg %p40
        $region34: #{tpu_custom_call.1} parent=31 // pred_check_branch
          %251 = sbr.rel (%p249) target = $region36
        $region35: #{tpu_custom_call.1} parent=31 // pred_region
          %p252 = scmp.lt.s32.totalorder %s20, 1
          %s253 = scalar_select %p252, %s20, 1
          %s254 = smul.addr %s253, 8
          %s255 = smul.addr %s254, 8
          %s256 = scalar_lea.vmem %s0, %s255
        $region36: #{tpu_custom_call.1} parent=31 // pred_fallthru
          _
        // Predicated region
        $region37: #{tpu_custom_call.1} parent=31 // pred_check
          %p257 = pneg %p66
        $region38: #{tpu_custom_call.1} parent=31 // pred_check_branch
          %259 = sbr.rel (%p257) target = $region40
        $region39: #{tpu_custom_call.1} parent=31 // pred_region
          %s260 = sand.u32 %s56, 1
          %s261 = scalar_lea.sflag [#allocation3], %s260
          %s262 = sand.u32 %s56, 1
          %s263 = smul.addr %s262, 8
          %s264 = scalar_lea.vmem [#allocation2], %s263
          %s266 = ssub.s32 128, 128
          %267 = vsyncadd %s261, %s266
          %s268 = smul.addr %s20, 128
          %s269 = scalar_lea.hbm %s1, %s268
          %s271 = sshll.u32 %s264, 4
          %s272 = int_to_ptr.vmem [resolvable:$true] %s271
          %274 = dma.hbm_to_vmem [thread:$0]  %s269, 128, %s272, %s261
        $region40: #{tpu_custom_call.1} parent=31 // pred_fallthru
          _
        // Predicated region
        $region41: #{tpu_custom_call.1} parent=31 // pred_check
          %p275 = pneg %p92
        $region42: #{tpu_custom_call.1} parent=31 // pred_check_branch
          %277 = sbr.rel (%p275) target = $region44
        $region43: #{tpu_custom_call.1} parent=31 // pred_region
          %p278 = scmp.lt.s32.totalorder %s20, 1
          %s279 = scalar_select %p278, %s20, 1
          %s280 = smul.addr %s279, 16
          %s281 = smul.addr %s280, 4
          %s282 = scalar_lea.vmem %s2, %s281
        $region44: #{tpu_custom_call.1} parent=31 // pred_fallthru
          _
      $region32: #{tpu_custom_call.1} parent=5 // pred_fallthru
        _
      %p283 = scmp.le.s32.totalorder 1, %s20
      %p284 = scmp.lt.s32.totalorder %s20, 3
      %p285 = pnand %p283, %p284
      %p286 = pneg %p285
      // Predicated region
      $region45: #{tpu_custom_call.1} parent=5 // pred_check
        _
      $region46: #{tpu_custom_call.1} parent=5 // pred_check_branch
        %288 = sbr.rel (%p285) target = $region48
      $region47: #{tpu_custom_call.1} parent=5 // pred_region
        %s289 = ssub.s32 %s20, 1
        %s290 = sand.u32 %s59, 1
        %s291 = scalar_lea.sflag [#allocation3], %s290
        %s292 = sand.u32 %s59, 1
        %s293 = smul.addr %s292, 8
        %s294 = scalar_lea.vmem [#allocation2], %s293
        // Predicated region
        $region49: #{tpu_custom_call.1} parent=47 // pred_check
          %p295 = pneg %p72
        $region50: #{tpu_custom_call.1} parent=47 // pred_check_branch
          %297 = sbr.rel (%p295) target = $region52
        $region51: #{tpu_custom_call.1} parent=47 // pred_region
          %298 = dma.done %s291, 128
        $region52: #{tpu_custom_call.1} parent=47 // pred_fallthru
          _
        // Predicated region
        $region53: #{tpu_custom_call.1} parent=47 // pred_check
          %p299 = pneg %p161
        $region54: #{tpu_custom_call.1} parent=47 // pred_check_branch
          %301 = sbr.rel (%p299) target = $region56
        $region55: #{tpu_custom_call.1} parent=47 // pred_region
          %302 = dma.done [#allocation6], 512
        $region56: #{tpu_custom_call.1} parent=47 // pred_fallthru
          _
        %p303 = scmp.lt.s32.totalorder %s25, 1
        %s304 = scalar_select %p303, %s25, 1
        %s305 = smul.addr %s304, 8
        %s306 = smul.addr %s305, 8
        %s307 = scalar_lea.vmem %s0, %s306
        %p308 = pneg %p46
        %p309 = pneg %p43
        %s310 = sand.u32 %s59, 1
        %s311 = scalar_lea.sflag [#allocation3], %s310
        %s312 = sand.u32 %s59, 1
        %s313 = smul.addr %s312, 8
        %s314 = scalar_lea.vmem [#allocation2], %s313
        %p315 = pneg %p72
        %p316 = pneg %p69
        %p317 = scmp.lt.s32.totalorder %s25, 1
        %s318 = scalar_select %p317, %s25, 1
        %s319 = smul.addr %s318, 16
        %s320 = smul.addr %s319, 4
        %s321 = scalar_lea.vmem %s2, %s320
        %p322 = pneg %p98
        %p323 = pneg %p95
        %p324 = pneg %p119
        %p325 = pneg %p116
        %p326 = pneg %p140
        %p327 = pneg %p137
        %p328 = pneg %p161
        %p329 = pneg %p158
        %p330 = pneg %p182
        %p331 = pneg %p179
        %p332 = pneg %p208
        %p333 = pneg %p205
        %s334 = sand.u32 %s195, 1
        %s335 = scalar_lea.sflag [#allocation4], %s334
        %s336 = sand.u32 %s195, 1
        %s337 = smul.addr %s336, 64
        %s338 = scalar_lea.vmem [#allocation7], %s337
        %p339 = scmp.lt.s32.totalorder %s25, 1
        %s340 = scalar_select %p339, %s25, 1
        %s341 = smul.addr %s340, 8
        %s342 = smul.addr %s341, 8
        %s343 = scalar_lea.vmem %s0, %s342
        %p344 = scmp.lt.s32.totalorder %s25, 1
        %s345 = scalar_select %p344, %s25, 1
        %s346 = smul.addr %s345, 16
        %s347 = smul.addr %s346, 4
        %s348 = scalar_lea.vmem %s2, %s347
        %v349 = vld [vmem:[%s343] sm:$0xff]
        %v350 = vld [vmem:[%s343 + $0x8] sm:$0xff]
        %v351 = vld [vmem:[%s343 + $0x10] sm:$0xff]
        %v352 = vld [vmem:[%s343 + $0x18] sm:$0xff]
        %v353 = vld [vmem:[%s343 + $0x20] sm:$0xff]
        %v354 = vld [vmem:[%s343 + $0x28] sm:$0xff]
        %v355 = vld [vmem:[%s343 + $0x30] sm:$0xff]
        %v356 = vld [vmem:[%s343 + $0x38] sm:$0xff]
        %v357 = vld [vmem:[%s3] sm:$0x7]
        %v358 = vld [vmem:[%s4] sm:$0x1]
        %v360 = vlaneseq
        %v361 = vshrl.u32 %v360, 7
        %v362 = vsub.s32 0, %v361
        %v363 = vrot.slane %v358, %v362
        %vm365 = vcmask 23552
        %v367 = vsel %vm365, %v349, 0
        %v370 = vsel %vm365, %v350, 0
        %v373 = vsel %vm365, %v351, 0
        %v376 = vsel %vm365, %v352, 0
        %v379 = vsel %vm365, %v353, 0
        %v382 = vsel %vm365, %v354, 0
        %v385 = vsel %vm365, %v355, 0
        %v388 = vsel %vm365, %v356, 0
        %vm390 = vcmask 1042432
        %v392 = vsel %vm390, %v357, 0
        %394 = vmatprep.subr.mxu0 0.0
        %395 = vmatpush1.msra.mxu0 %v392
        %396 = vmatprep.subr.mxu0 0.0
        %397 = vmatpush1.msra.mxu0 0.0
        %398 = vmatprep.subr.mxu0 0.0
        %399 = vmatpush1.msra.mxu0 0.0
        %400 = vmatprep.subr.mxu0 0.0
        %401 = vmatpush1.msra.mxu0 0.0
        %402 = vmatprep.subr.mxu0 0.0
        %403 = vmatpush1.msra.mxu0 0.0
        %404 = vmatprep.subr.mxu0 0.0
        %405 = vmatpush1.msra.mxu0 0.0
        %406 = vmatprep.subr.mxu0 0.0
        %407 = vmatpush1.msra.mxu0 0.0
        %408 = vmatprep.subr.mxu0 0.0
        %409 = vmatpush1.msra.mxu0 0.0
        %410 = vmatprep.subr.mxu0 0.0
        %411 = vmatpush1.msra.mxu0 0.0
        %412 = vmatprep.subr.mxu0 0.0
        %413 = vmatpush1.msra.mxu0 0.0
        %414 = vmatprep.subr.mxu0 0.0
        %415 = vmatpush1.msra.mxu0 0.0
        %416 = vmatprep.subr.mxu0 0.0
        %417 = vmatpush1.msra.mxu0 0.0
        %418 = vmatprep.subr.mxu0 0.0
        %419 = vmatpush1.msra.mxu0 0.0
        %420 = vmatprep.subr.mxu0 0.0
        %421 = vmatpush1.msra.mxu0 0.0
        %422 = vmatprep.subr.mxu0 0.0
        %423 = vmatpush1.msra.mxu0 0.0
        %424 = vmatprep.subr.mxu0 0.0
        %425 = vmatpush1.msra.mxu0 0.0
        %426 = vmatprep.subr.mxu0 0.0
        %427 = vmatpush1.msra.mxu0 0.0
        %428 = vmatprep.subr.mxu0 0.0
        %429 = vmatpush1.msra.mxu0 0.0
        %430 = vmatprep.subr.mxu0 0.0
        %431 = vmatpush1.msra.mxu0 0.0
        %432 = vmatprep.subr.mxu0 0.0
        %433 = vmatpush1.msra.mxu0 0.0
        %434 = vmatprep.subr.mxu0 0.0
        %435 = vmatpush1.msra.mxu0 0.0
        %436 = vmatprep.subr.mxu0 0.0
        %437 = vmatpush1.msra.mxu0 0.0
        %438 = vmatprep.subr.mxu0 0.0
        %439 = vmatpush1.msra.mxu0 0.0
        %440 = vmatprep.subr.mxu0 0.0
        %441 = vmatpush1.msra.mxu0 0.0
        %442 = vmatprep.subr.mxu0 0.0
        %443 = vmatpush1.msra.mxu0 0.0
        %444 = vmatprep.subr.mxu0 0.0
        %445 = vmatpush1.msra.mxu0 0.0
        %446 = vmatprep.subr.mxu0 0.0
        %447 = vmatpush1.msra.mxu0 0.0
        %448 = vmatprep.subr.mxu0 0.0
        %449 = vmatpush1.msra.mxu0 0.0
        %450 = vmatprep.subr.mxu0 0.0
        %451 = vmatpush1.msra.mxu0 0.0
        %452 = vmatprep.subr.mxu0 0.0
        %453 = vmatpush1.msra.mxu0 0.0
        %454 = vmatprep.subr.mxu0 0.0
        %455 = vmatpush1.msra.mxu0 0.0
        %456 = vmatprep.subr.mxu0 0.0
        %457 = vmatpush1.msra.mxu0 0.0
        %458 = vmatprep.mubr.f32.mxu0 0.0
        %459 = vmatmul.mubr.f32.gmra.mrb[0].mxu0 %v367
        %v460 = vpop.f32.mrb[0].mxu0
        %v461 = vadd.f32 %v363, %v460
        %v462 = vpop.f32.mrb[0].mxu0
        %463 = vmatprep.mubr.f32.mxu0 0.0
        %464 = vmatmul.mubr.f32.gmra.mrb[0].mxu0 %v370
        %v465 = vpop.f32.mrb[0].mxu0
        %v466 = vadd.f32 %v363, %v465
        %v467 = vpop.f32.mrb[0].mxu0
        %468 = vmatprep.mubr.f32.mxu0 0.0
        %469 = vmatmul.mubr.f32.gmra.mrb[0].mxu0 %v373
        %v470 = vpop.f32.mrb[0].mxu0
        %v471 = vadd.f32 %v363, %v470
        %v472 = vpop.f32.mrb[0].mxu0
        %473 = vmatprep.mubr.f32.mxu0 0.0
        %474 = vmatmul.mubr.f32.gmra.mrb[0].mxu0 %v376
        %v475 = vpop.f32.mrb[0].mxu0
        %v476 = vadd.f32 %v363, %v475
        %v477 = vpop.f32.mrb[0].mxu0
        %478 = vmatprep.mubr.f32.mxu0 0.0
        %479 = vmatmul.mubr.f32.gmra.mrb[0].mxu0 %v379
        %v480 = vpop.f32.mrb[0].mxu0
        %v481 = vadd.f32 %v363, %v480
        %v482 = vpop.f32.mrb[0].mxu0
        %483 = vmatprep.mubr.f32.mxu0 0.0
        %484 = vmatmul.mubr.f32.gmra.mrb[0].mxu0 %v382
        %v485 = vpop.f32.mrb[0].mxu0
        %v486 = vadd.f32 %v363, %v485
        %v487 = vpop.f32.mrb[0].mxu0
        %488 = vmatprep.mubr.f32.mxu0 0.0
        %489 = vmatmul.mubr.f32.gmra.mrb[0].mxu0 %v385
        %v490 = vpop.f32.mrb[0].mxu0
        %v491 = vadd.f32 %v363, %v490
        %v492 = vpop.f32.mrb[0].mxu0
        %493 = vmatprep.mubr.f32.mxu0 0.0
        %494 = vmatmul.mubr.f32.gmra.mrb[0].mxu0 %v388
        %v495 = vpop.f32.mrb[0].mxu0
        %v496 = vadd.f32 %v363, %v495
        %v497 = vpop.f32.mrb[0].mxu0
        %498 = vdwg.mxu0
        %v499 = vld [vmem:[%s294] sm:$0xff]
        %v501 = vcombine.high %v499, %v499
        %v503 = vunpack.c.l.s4 1966171168
        %v504 = vunpack.c.0.s8 %v503
        %v505 = vlaneseq
        %v506 = vshrl.u32 %v505, 7
        %v507 = vsub.s32 %v504, %v506
        %v508 = vrot.slane %v499, %v507
        %v510 = vunpack.c.l.s4 1966171168
        %v511 = vunpack.c.0.s8 %v510
        %v512 = vlaneseq
        %v513 = vshrl.u32 %v512, 7
        %v514 = vsub.s32 %v511, %v513
        %v515 = vrot.slane %v501, %v514
        %v516 = vcombine.high %v508, %v508
        %v517 = vcombine.high %v515, %v515
        %v519 = vunpack.c.l.s4 1966171168
        %v520 = vunpack.c.0.s8 %v519
        %v521 = vlaneseq
        %v522 = vshrl.u32 %v521, 7
        %v523 = vsub.s32 %v520, %v522
        %v524 = vrot.slane %v508, %v523
        %v526 = vunpack.c.l.s4 1966171168
        %v527 = vunpack.c.0.s8 %v526
        %v528 = vlaneseq
        %v529 = vshrl.u32 %v528, 7
        %v530 = vsub.s32 %v527, %v529
        %v531 = vrot.slane %v515, %v530
        %v533 = vunpack.c.l.s4 1966171168
        %v534 = vunpack.c.0.s8 %v533
        %v535 = vlaneseq
        %v536 = vshrl.u32 %v535, 7
        %v537 = vsub.s32 %v534, %v536
        %v538 = vrot.slane %v516, %v537
        %v540 = vunpack.c.l.s4 1966171168
        %v541 = vunpack.c.0.s8 %v540
        %v542 = vlaneseq
        %v543 = vshrl.u32 %v542, 7
        %v544 = vsub.s32 %v541, %v543
        %v545 = vrot.slane %v517, %v544
        %v546 = vcombine.high %v524, %v524
        %v547 = vcombine.high %v531, %v531
        %v548 = vcombine.high %v538, %v538
        %v549 = vcombine.high %v545, %v545
        %v550 = vlaneseq
        %v551 = vshrl.u32 %v550, 7
        %v552 = vsub.s32 0, %v551
        %v553 = vrot.slane %v524, %v552
        %v554 = vlaneseq
        %v555 = vshrl.u32 %v554, 7
        %v556 = vsub.s32 0, %v555
        %v557 = vrot.slane %v538, %v556
        %v558 = vlaneseq
        %v559 = vshrl.u32 %v558, 7
        %v560 = vsub.s32 0, %v559
        %v561 = vrot.slane %v546, %v560
        %v562 = vlaneseq
        %v563 = vshrl.u32 %v562, 7
        %v564 = vsub.s32 0, %v563
        %v565 = vrot.slane %v548, %v564
        %v566 = vlaneseq
        %v567 = vshrl.u32 %v566, 7
        %v568 = vsub.s32 0, %v567
        %v569 = vrot.slane %v531, %v568
        %v570 = vlaneseq
        %v571 = vshrl.u32 %v570, 7
        %v572 = vsub.s32 0, %v571
        %v573 = vrot.slane %v545, %v572
        %v574 = vlaneseq
        %v575 = vshrl.u32 %v574, 7
        %v576 = vsub.s32 0, %v575
        %v577 = vrot.slane %v547, %v576
        %v578 = vlaneseq
        %v579 = vshrl.u32 %v578, 7
        %v580 = vsub.s32 0, %v579
        %v581 = vrot.slane %v549, %v580
        %v590 = vadd.f32 %v461, %v553
        %v591 = vadd.f32 %v466, %v557
        %v592 = vadd.f32 %v471, %v561
        %v593 = vadd.f32 %v476, %v565
        %v594 = vadd.f32 %v481, %v569
        %v595 = vadd.f32 %v486, %v573
        %v596 = vadd.f32 %v491, %v577
        %v597 = vadd.f32 %v496, %v581
        %v598 = vxor.u32 %v590, 2147483648
        %v599 = vxor.u32 %v591, 2147483648
        %v600 = vxor.u32 %v592, 2147483648
        %v601 = vxor.u32 %v593, 2147483648
        %v602 = vxor.u32 %v594, 2147483648
        %v603 = vxor.u32 %v595, 2147483648
        %v604 = vxor.u32 %v596, 2147483648
        %v605 = vxor.u32 %v597, 2147483648
        %v606 = vmul.f32 %v598, 1.442695
        %v607 = vpow.pop %v606
        %v608 = vmul.f32 %v599, 1.442695
        %v609 = vpow.pop %v608
        %v610 = vmul.f32 %v600, 1.442695
        %v611 = vpow.pop %v610
        %v612 = vmul.f32 %v601, 1.442695
        %v613 = vpow.pop %v612
        %v614 = vmul.f32 %v602, 1.442695
        %v615 = vpow.pop %v614
        %v616 = vmul.f32 %v603, 1.442695
        %v617 = vpow.pop %v616
        %v618 = vmul.f32 %v604, 1.442695
        %v619 = vpow.pop %v618
        %v620 = vmul.f32 %v605, 1.442695
        %v621 = vpow.pop %v620
        %v622 = vadd.f32 %v607, 1.0
        %v623 = vadd.f32 %v609, 1.0
        %v624 = vadd.f32 %v611, 1.0
        %v625 = vadd.f32 %v613, 1.0
        %v626 = vadd.f32 %v615, 1.0
        %v627 = vadd.f32 %v617, 1.0
        %v628 = vadd.f32 %v619, 1.0
        %v629 = vadd.f32 %v621, 1.0
        %v630 = vrcp.pop %v622
        %v631 = vmul.f32 1.0, %v630
        %v632 = vrcp.pop %v623
        %v633 = vmul.f32 1.0, %v632
        %v634 = vrcp.pop %v624
        %v635 = vmul.f32 1.0, %v634
        %v636 = vrcp.pop %v625
        %v637 = vmul.f32 1.0, %v636
        %v638 = vrcp.pop %v626
        %v639 = vmul.f32 1.0, %v638
        %v640 = vrcp.pop %v627
        %v641 = vmul.f32 1.0, %v640
        %v642 = vrcp.pop %v628
        %v643 = vmul.f32 1.0, %v642
        %v644 = vrcp.pop %v629
        %v645 = vmul.f32 1.0, %v644
        %v646 = vmul.f32 %v590, %v631
        %v647 = vmul.f32 %v591, %v633
        %v648 = vmul.f32 %v592, %v635
        %v649 = vmul.f32 %v593, %v637
        %v650 = vmul.f32 %v594, %v639
        %v651 = vmul.f32 %v595, %v641
        %v652 = vmul.f32 %v596, %v643
        %v653 = vmul.f32 %v597, %v645
        %v654 = vld [vmem:[#allocation5] sm:$0xff]
        %v655 = vld [vmem:[#allocation5 + $0x8] sm:$0xff]
        %v656 = vld [vmem:[#allocation5 + $0x10] sm:$0xff]
        %v657 = vld [vmem:[#allocation5 + $0x18] sm:$0xff]
        %v658 = vld [vmem:[%s6] sm:$0x1]
        %v660 = vlaneseq
        %v661 = vshrl.u32 %v660, 7
        %v662 = vsub.s32 0, %v661
        %v663 = vrot.slane %v658, %v662
        %vm665 = vcmask 261120
        %v667 = vsel %vm665, %v646, 0
        %v670 = vsel %vm665, %v647, 0
        %v673 = vsel %vm665, %v648, 0
        %v676 = vsel %vm665, %v649, 0
        %v679 = vsel %vm665, %v650, 0
        %v682 = vsel %vm665, %v651, 0
        %v685 = vsel %vm665, %v652, 0
        %v688 = vsel %vm665, %v653, 0
        %690 = vmatprep.subr.mxu0 0.0
        %691 = vmatpush1.msra.mxu0 %v654
        %692 = vmatprep.subr.mxu0 0.0
        %693 = vmatpush1.msra.mxu0 %v655
        %694 = vmatprep.subr.mxu0 0.0
        %695 = vmatpush1.msra.mxu0 %v656
        %696 = vmatprep.subr.mxu0 0.0
        %697 = vmatpush1.msra.mxu0 %v657
        %698 = vmatprep.subr.mxu0 0.0
        %699 = vmatpush1.msra.mxu0 0.0
        %700 = vmatprep.subr.mxu0 0.0
        %701 = vmatpush1.msra.mxu0 0.0
        %702 = vmatprep.subr.mxu0 0.0
        %703 = vmatpush1.msra.mxu0 0.0
        %704 = vmatprep.subr.mxu0 0.0
        %705 = vmatpush1.msra.mxu0 0.0
        %706 = vmatprep.subr.mxu0 0.0
        %707 = vmatpush1.msra.mxu0 0.0
        %708 = vmatprep.subr.mxu0 0.0
        %709 = vmatpush1.msra.mxu0 0.0
        %710 = vmatprep.subr.mxu0 0.0
        %711 = vmatpush1.msra.mxu0 0.0
        %712 = vmatprep.subr.mxu0 0.0
        %713 = vmatpush1.msra.mxu0 0.0
        %714 = vmatprep.subr.mxu0 0.0
        %715 = vmatpush1.msra.mxu0 0.0
        %716 = vmatprep.subr.mxu0 0.0
        %717 = vmatpush1.msra.mxu0 0.0
        %718 = vmatprep.subr.mxu0 0.0
        %719 = vmatpush1.msra.mxu0 0.0
        %720 = vmatprep.subr.mxu0 0.0
        %721 = vmatpush1.msra.mxu0 0.0
        %722 = vmatprep.subr.mxu0 0.0
        %723 = vmatpush1.msra.mxu0 0.0
        %724 = vmatprep.subr.mxu0 0.0
        %725 = vmatpush1.msra.mxu0 0.0
        %726 = vmatprep.subr.mxu0 0.0
        %727 = vmatpush1.msra.mxu0 0.0
        %728 = vmatprep.subr.mxu0 0.0
        %729 = vmatpush1.msra.mxu0 0.0
        %730 = vmatprep.subr.mxu0 0.0
        %731 = vmatpush1.msra.mxu0 0.0
        %732 = vmatprep.subr.mxu0 0.0
        %733 = vmatpush1.msra.mxu0 0.0
        %734 = vmatprep.subr.mxu0 0.0
        %735 = vmatpush1.msra.mxu0 0.0
        %736 = vmatprep.subr.mxu0 0.0
        %737 = vmatpush1.msra.mxu0 0.0
        %738 = vmatprep.subr.mxu0 0.0
        %739 = vmatpush1.msra.mxu0 0.0
        %740 = vmatprep.subr.mxu0 0.0
        %741 = vmatpush1.msra.mxu0 0.0
        %742 = vmatprep.subr.mxu0 0.0
        %743 = vmatpush1.msra.mxu0 0.0
        %744 = vmatprep.subr.mxu0 0.0
        %745 = vmatpush1.msra.mxu0 0.0
        %746 = vmatprep.subr.mxu0 0.0
        %747 = vmatpush1.msra.mxu0 0.0
        %748 = vmatprep.subr.mxu0 0.0
        %749 = vmatpush1.msra.mxu0 0.0
        %750 = vmatprep.subr.mxu0 0.0
        %751 = vmatpush1.msra.mxu0 0.0
        %752 = vmatprep.subr.mxu0 0.0
        %753 = vmatpush1.msra.mxu0 0.0
        %754 = vmatprep.mubr.f32.mxu0 0.0
        %755 = vmatmul.mubr.f32.gmra.mrb[0].mxu0 %v667
        %v756 = vpop.f32.mrb[0].mxu0
        %v757 = vadd.f32 %v663, %v756
        %v758 = vpop.f32.mrb[0].mxu0
        %759 = vmatprep.mubr.f32.mxu0 0.0
        %760 = vmatmul.mubr.f32.gmra.mrb[0].mxu0 %v670
        %v761 = vpop.f32.mrb[0].mxu0
        %v762 = vadd.f32 %v663, %v761
        %v763 = vpop.f32.mrb[0].mxu0
        %764 = vmatprep.mubr.f32.mxu0 0.0
        %765 = vmatmul.mubr.f32.gmra.mrb[0].mxu0 %v673
        %v766 = vpop.f32.mrb[0].mxu0
        %v767 = vadd.f32 %v663, %v766
        %v768 = vpop.f32.mrb[0].mxu0
        %769 = vmatprep.mubr.f32.mxu0 0.0
        %770 = vmatmul.mubr.f32.gmra.mrb[0].mxu0 %v676
        %v771 = vpop.f32.mrb[0].mxu0
        %v772 = vadd.f32 %v663, %v771
        %v773 = vpop.f32.mrb[0].mxu0
        %774 = vmatprep.mubr.f32.mxu0 0.0
        %775 = vmatmul.mubr.f32.gmra.mrb[0].mxu0 %v679
        %v776 = vpop.f32.mrb[0].mxu0
        %v777 = vadd.f32 %v663, %v776
        %v778 = vpop.f32.mrb[0].mxu0
        %779 = vmatprep.mubr.f32.mxu0 0.0
        %780 = vmatmul.mubr.f32.gmra.mrb[0].mxu0 %v682
        %v781 = vpop.f32.mrb[0].mxu0
        %v782 = vadd.f32 %v663, %v781
        %v783 = vpop.f32.mrb[0].mxu0
        %784 = vmatprep.mubr.f32.mxu0 0.0
        %785 = vmatmul.mubr.f32.gmra.mrb[0].mxu0 %v685
        %v786 = vpop.f32.mrb[0].mxu0
        %v787 = vadd.f32 %v663, %v786
        %v788 = vpop.f32.mrb[0].mxu0
        %789 = vmatprep.mubr.f32.mxu0 0.0
        %790 = vmatmul.mubr.f32.gmra.mrb[0].mxu0 %v688
        %v791 = vpop.f32.mrb[0].mxu0
        %v792 = vadd.f32 %v663, %v791
        %v793 = vpop.f32.mrb[0].mxu0
        %794 = vdwg.mxu0
        %v795 = vld [vmem:[%s348] sm:$0xf]
        %v796 = vld [vmem:[%s348 + $0x4] sm:$0xf]
        %v797 = vld [vmem:[%s348 + $0x8] sm:$0xf]
        %v798 = vld [vmem:[%s348 + $0xc] sm:$0xf]
        %v799 = vld [vmem:[%s348 + $0x10] sm:$0xf]
        %v800 = vld [vmem:[%s348 + $0x14] sm:$0xf]
        %v801 = vld [vmem:[%s348 + $0x18] sm:$0xf]
        %v802 = vld [vmem:[%s348 + $0x1c] sm:$0xf]
        %vm803 = vcmask 130048
        %v805 = vsel %vm803, %v795, 0
        %v808 = vsel %vm803, %v757, 0
        %810 = vmatprep.subr.mxu0 0.0
        %811 = vmatpush1.xpose.msra.mxu0 %v808
        %812 = vmatprep.subr.mxu0 0.0
        %813 = vmatpush1.xpose.msra.mxu0 0.0
        %814 = vmatprep.subr.mxu0 0.0
        %815 = vmatpush1.xpose.msra.mxu0 0.0
        %816 = vmatprep.subr.mxu0 0.0
        %817 = vmatpush1.xpose.msra.mxu0 0.0
        %818 = vmatprep.subr.mxu0 0.0
        %819 = vmatpush1.xpose.msra.mxu0 0.0
        %820 = vmatprep.subr.mxu0 0.0
        %821 = vmatpush1.xpose.msra.mxu0 0.0
        %822 = vmatprep.subr.mxu0 0.0
        %823 = vmatpush1.xpose.msra.mxu0 0.0
        %824 = vmatprep.subr.mxu0 0.0
        %825 = vmatpush1.xpose.msra.mxu0 0.0
        %826 = vmatprep.subr.mxu0 0.0
        %827 = vmatpush1.xpose.msra.mxu0 0.0
        %828 = vmatprep.subr.mxu0 0.0
        %829 = vmatpush1.xpose.msra.mxu0 0.0
        %830 = vmatprep.subr.mxu0 0.0
        %831 = vmatpush1.xpose.msra.mxu0 0.0
        %832 = vmatprep.subr.mxu0 0.0
        %833 = vmatpush1.xpose.msra.mxu0 0.0
        %834 = vmatprep.subr.mxu0 0.0
        %835 = vmatpush1.xpose.msra.mxu0 0.0
        %836 = vmatprep.subr.mxu0 0.0
        %837 = vmatpush1.xpose.msra.mxu0 0.0
        %838 = vmatprep.subr.mxu0 0.0
        %839 = vmatpush1.xpose.msra.mxu0 0.0
        %840 = vmatprep.subr.mxu0 0.0
        %841 = vmatpush1.xpose.msra.mxu0 0.0
        %842 = vmatprep.subr.mxu0 0.0
        %843 = vmatpush1.xpose.msra.mxu0 0.0
        %844 = vmatprep.subr.mxu0 0.0
        %845 = vmatpush1.xpose.msra.mxu0 0.0
        %846 = vmatprep.subr.mxu0 0.0
        %847 = vmatpush1.xpose.msra.mxu0 0.0
        %848 = vmatprep.subr.mxu0 0.0
        %849 = vmatpush1.xpose.msra.mxu0 0.0
        %850 = vmatprep.subr.mxu0 0.0
        %851 = vmatpush1.xpose.msra.mxu0 0.0
        %852 = vmatprep.subr.mxu0 0.0
        %853 = vmatpush1.xpose.msra.mxu0 0.0
        %854 = vmatprep.subr.mxu0 0.0
        %855 = vmatpush1.xpose.msra.mxu0 0.0
        %856 = vmatprep.subr.mxu0 0.0
        %857 = vmatpush1.xpose.msra.mxu0 0.0
        %858 = vmatprep.subr.mxu0 0.0
        %859 = vmatpush1.xpose.msra.mxu0 0.0
        %860 = vmatprep.subr.mxu0 0.0
        %861 = vmatpush1.xpose.msra.mxu0 0.0
        %862 = vmatprep.subr.mxu0 0.0
        %863 = vmatpush1.xpose.msra.mxu0 0.0
        %864 = vmatprep.subr.mxu0 0.0
        %865 = vmatpush1.xpose.msra.mxu0 0.0
        %866 = vmatprep.subr.mxu0 0.0
        %867 = vmatpush1.xpose.msra.mxu0 0.0
        %868 = vmatprep.subr.mxu0 0.0
        %869 = vmatpush1.xpose.msra.mxu0 0.0
        %870 = vmatprep.subr.mxu0 0.0
        %871 = vmatpush1.xpose.msra.mxu0 0.0
        %872 = vmatprep.subr.mxu0 0.0
        %873 = vmatpush1.xpose.msra.mxu0 0.0
        %874 = vmatprep.mubr.f32.mxu0 0.0
        %875 = vmatmul.mubr.f32.gmra.mrb[0].mxu0 %v805
        %v876 = vpop.f32.mrb[0].mxu0
        %v877 = vadd.f32 0.0, %v876
        %v878 = vpop.f32.mrb[0].mxu0
        %879 = vdwg.mxu0
        %v881 = vsel %vm803, %v796, 0
        %v884 = vsel %vm803, %v762, 0
        %886 = vmatprep.subr.mxu0 0.0
        %887 = vmatpush1.xpose.msra.mxu0 %v884
        %888 = vmatprep.subr.mxu0 0.0
        %889 = vmatpush1.xpose.msra.mxu0 0.0
        %890 = vmatprep.subr.mxu0 0.0
        %891 = vmatpush1.xpose.msra.mxu0 0.0
        %892 = vmatprep.subr.mxu0 0.0
        %893 = vmatpush1.xpose.msra.mxu0 0.0
        %894 = vmatprep.subr.mxu0 0.0
        %895 = vmatpush1.xpose.msra.mxu0 0.0
        %896 = vmatprep.subr.mxu0 0.0
        %897 = vmatpush1.xpose.msra.mxu0 0.0
        %898 = vmatprep.subr.mxu0 0.0
        %899 = vmatpush1.xpose.msra.mxu0 0.0
        %900 = vmatprep.subr.mxu0 0.0
        %901 = vmatpush1.xpose.msra.mxu0 0.0
        %902 = vmatprep.subr.mxu0 0.0
        %903 = vmatpush1.xpose.msra.mxu0 0.0
        %904 = vmatprep.subr.mxu0 0.0
        %905 = vmatpush1.xpose.msra.mxu0 0.0
        %906 = vmatprep.subr.mxu0 0.0
        %907 = vmatpush1.xpose.msra.mxu0 0.0
        %908 = vmatprep.subr.mxu0 0.0
        %909 = vmatpush1.xpose.msra.mxu0 0.0
        %910 = vmatprep.subr.mxu0 0.0
        %911 = vmatpush1.xpose.msra.mxu0 0.0
        %912 = vmatprep.subr.mxu0 0.0
        %913 = vmatpush1.xpose.msra.mxu0 0.0
        %914 = vmatprep.subr.mxu0 0.0
        %915 = vmatpush1.xpose.msra.mxu0 0.0
        %916 = vmatprep.subr.mxu0 0.0
        %917 = vmatpush1.xpose.msra.mxu0 0.0
        %918 = vmatprep.subr.mxu0 0.0
        %919 = vmatpush1.xpose.msra.mxu0 0.0
        %920 = vmatprep.subr.mxu0 0.0
        %921 = vmatpush1.xpose.msra.mxu0 0.0
        %922 = vmatprep.subr.mxu0 0.0
        %923 = vmatpush1.xpose.msra.mxu0 0.0
        %924 = vmatprep.subr.mxu0 0.0
        %925 = vmatpush1.xpose.msra.mxu0 0.0
        %926 = vmatprep.subr.mxu0 0.0
        %927 = vmatpush1.xpose.msra.mxu0 0.0
        %928 = vmatprep.subr.mxu0 0.0
        %929 = vmatpush1.xpose.msra.mxu0 0.0
        %930 = vmatprep.subr.mxu0 0.0
        %931 = vmatpush1.xpose.msra.mxu0 0.0
        %932 = vmatprep.subr.mxu0 0.0
        %933 = vmatpush1.xpose.msra.mxu0 0.0
        %934 = vmatprep.subr.mxu0 0.0
        %935 = vmatpush1.xpose.msra.mxu0 0.0
        %936 = vmatprep.subr.mxu0 0.0
        %937 = vmatpush1.xpose.msra.mxu0 0.0
        %938 = vmatprep.subr.mxu0 0.0
        %939 = vmatpush1.xpose.msra.mxu0 0.0
        %940 = vmatprep.subr.mxu0 0.0
        %941 = vmatpush1.xpose.msra.mxu0 0.0
        %942 = vmatprep.subr.mxu0 0.0
        %943 = vmatpush1.xpose.msra.mxu0 0.0
        %944 = vmatprep.subr.mxu0 0.0
        %945 = vmatpush1.xpose.msra.mxu0 0.0
        %946 = vmatprep.subr.mxu0 0.0
        %947 = vmatpush1.xpose.msra.mxu0 0.0
        %948 = vmatprep.subr.mxu0 0.0
        %949 = vmatpush1.xpose.msra.mxu0 0.0
        %950 = vmatprep.mubr.f32.mxu0 0.0
        %951 = vmatmul.mubr.f32.gmra.mrb[0].mxu0 %v881
        %v952 = vpop.f32.mrb[0].mxu0
        %v953 = vadd.f32 0.0, %v952
        %v954 = vpop.f32.mrb[0].mxu0
        %955 = vdwg.mxu0
        %v957 = vsel %vm803, %v797, 0
        %v960 = vsel %vm803, %v767, 0
        %962 = vmatprep.subr.mxu0 0.0
        %963 = vmatpush1.xpose.msra.mxu0 %v960
        %964 = vmatprep.subr.mxu0 0.0
        %965 = vmatpush1.xpose.msra.mxu0 0.0
        %966 = vmatprep.subr.mxu0 0.0
        %967 = vmatpush1.xpose.msra.mxu0 0.0
        %968 = vmatprep.subr.mxu0 0.0
        %969 = vmatpush1.xpose.msra.mxu0 0.0
        %970 = vmatprep.subr.mxu0 0.0
        %971 = vmatpush1.xpose.msra.mxu0 0.0
        %972 = vmatprep.subr.mxu0 0.0
        %973 = vmatpush1.xpose.msra.mxu0 0.0
        %974 = vmatprep.subr.mxu0 0.0
        %975 = vmatpush1.xpose.msra.mxu0 0.0
        %976 = vmatprep.subr.mxu0 0.0
        %977 = vmatpush1.xpose.msra.mxu0 0.0
        %978 = vmatprep.subr.mxu0 0.0
        %979 = vmatpush1.xpose.msra.mxu0 0.0
        %980 = vmatprep.subr.mxu0 0.0
        %981 = vmatpush1.xpose.msra.mxu0 0.0
        %982 = vmatprep.subr.mxu0 0.0
        %983 = vmatpush1.xpose.msra.mxu0 0.0
        %984 = vmatprep.subr.mxu0 0.0
        %985 = vmatpush1.xpose.msra.mxu0 0.0
        %986 = vmatprep.subr.mxu0 0.0
        %987 = vmatpush1.xpose.msra.mxu0 0.0
        %988 = vmatprep.subr.mxu0 0.0
        %989 = vmatpush1.xpose.msra.mxu0 0.0
        %990 = vmatprep.subr.mxu0 0.0
        %991 = vmatpush1.xpose.msra.mxu0 0.0
        %992 = vmatprep.subr.mxu0 0.0
        %993 = vmatpush1.xpose.msra.mxu0 0.0
        %994 = vmatprep.subr.mxu0 0.0
        %995 = vmatpush1.xpose.msra.mxu0 0.0
        %996 = vmatprep.subr.mxu0 0.0
        %997 = vmatpush1.xpose.msra.mxu0 0.0
        %998 = vmatprep.subr.mxu0 0.0
        %999 = vmatpush1.xpose.msra.mxu0 0.0
        %1000 = vmatprep.subr.mxu0 0.0
        %1001 = vmatpush1.xpose.msra.mxu0 0.0
        %1002 = vmatprep.subr.mxu0 0.0
        %1003 = vmatpush1.xpose.msra.mxu0 0.0
        %1004 = vmatprep.subr.mxu0 0.0
        %1005 = vmatpush1.xpose.msra.mxu0 0.0
        %1006 = vmatprep.subr.mxu0 0.0
        %1007 = vmatpush1.xpose.msra.mxu0 0.0
        %1008 = vmatprep.subr.mxu0 0.0
        %1009 = vmatpush1.xpose.msra.mxu0 0.0
        %1010 = vmatprep.subr.mxu0 0.0
        %1011 = vmatpush1.xpose.msra.mxu0 0.0
        %1012 = vmatprep.subr.mxu0 0.0
        %1013 = vmatpush1.xpose.msra.mxu0 0.0
        %1014 = vmatprep.subr.mxu0 0.0
        %1015 = vmatpush1.xpose.msra.mxu0 0.0
        %1016 = vmatprep.subr.mxu0 0.0
        %1017 = vmatpush1.xpose.msra.mxu0 0.0
        %1018 = vmatprep.subr.mxu0 0.0
        %1019 = vmatpush1.xpose.msra.mxu0 0.0
        %1020 = vmatprep.subr.mxu0 0.0
        %1021 = vmatpush1.xpose.msra.mxu0 0.0
        %1022 = vmatprep.subr.mxu0 0.0
        %1023 = vmatpush1.xpose.msra.mxu0 0.0
        %1024 = vmatprep.subr.mxu0 0.0
        %1025 = vmatpush1.xpose.msra.mxu0 0.0
        %1026 = vmatprep.mubr.f32.mxu0 0.0
        %1027 = vmatmul.mubr.f32.gmra.mrb[0].mxu0 %v957
        %v1028 = vpop.f32.mrb[0].mxu0
        %v1029 = vadd.f32 0.0, %v1028
        %v1030 = vpop.f32.mrb[0].mxu0
        %1031 = vdwg.mxu0
        %v1033 = vsel %vm803, %v798, 0
        %v1036 = vsel %vm803, %v772, 0
        %1038 = vmatprep.subr.mxu0 0.0
        %1039 = vmatpush1.xpose.msra.mxu0 %v1036
        %1040 = vmatprep.subr.mxu0 0.0
        %1041 = vmatpush1.xpose.msra.mxu0 0.0
        %1042 = vmatprep.subr.mxu0 0.0
        %1043 = vmatpush1.xpose.msra.mxu0 0.0
        %1044 = vmatprep.subr.mxu0 0.0
        %1045 = vmatpush1.xpose.msra.mxu0 0.0
        %1046 = vmatprep.subr.mxu0 0.0
        %1047 = vmatpush1.xpose.msra.mxu0 0.0
        %1048 = vmatprep.subr.mxu0 0.0
        %1049 = vmatpush1.xpose.msra.mxu0 0.0
        %1050 = vmatprep.subr.mxu0 0.0
        %1051 = vmatpush1.xpose.msra.mxu0 0.0
        %1052 = vmatprep.subr.mxu0 0.0
        %1053 = vmatpush1.xpose.msra.mxu0 0.0
        %1054 = vmatprep.subr.mxu0 0.0
        %1055 = vmatpush1.xpose.msra.mxu0 0.0
        %1056 = vmatprep.subr.mxu0 0.0
        %1057 = vmatpush1.xpose.msra.mxu0 0.0
        %1058 = vmatprep.subr.mxu0 0.0
        %1059 = vmatpush1.xpose.msra.mxu0 0.0
        %1060 = vmatprep.subr.mxu0 0.0
        %1061 = vmatpush1.xpose.msra.mxu0 0.0
        %1062 = vmatprep.subr.mxu0 0.0
        %1063 = vmatpush1.xpose.msra.mxu0 0.0
        %1064 = vmatprep.subr.mxu0 0.0
        %1065 = vmatpush1.xpose.msra.mxu0 0.0
        %1066 = vmatprep.subr.mxu0 0.0
        %1067 = vmatpush1.xpose.msra.mxu0 0.0
        %1068 = vmatprep.subr.mxu0 0.0
        %1069 = vmatpush1.xpose.msra.mxu0 0.0
        %1070 = vmatprep.subr.mxu0 0.0
        %1071 = vmatpush1.xpose.msra.mxu0 0.0
        %1072 = vmatprep.subr.mxu0 0.0
        %1073 = vmatpush1.xpose.msra.mxu0 0.0
        %1074 = vmatprep.subr.mxu0 0.0
        %1075 = vmatpush1.xpose.msra.mxu0 0.0
        %1076 = vmatprep.subr.mxu0 0.0
        %1077 = vmatpush1.xpose.msra.mxu0 0.0
        %1078 = vmatprep.subr.mxu0 0.0
        %1079 = vmatpush1.xpose.msra.mxu0 0.0
        %1080 = vmatprep.subr.mxu0 0.0
        %1081 = vmatpush1.xpose.msra.mxu0 0.0
        %1082 = vmatprep.subr.mxu0 0.0
        %1083 = vmatpush1.xpose.msra.mxu0 0.0
        %1084 = vmatprep.subr.mxu0 0.0
        %1085 = vmatpush1.xpose.msra.mxu0 0.0
        %1086 = vmatprep.subr.mxu0 0.0
        %1087 = vmatpush1.xpose.msra.mxu0 0.0
        %1088 = vmatprep.subr.mxu0 0.0
        %1089 = vmatpush1.xpose.msra.mxu0 0.0
        %1090 = vmatprep.subr.mxu0 0.0
        %1091 = vmatpush1.xpose.msra.mxu0 0.0
        %1092 = vmatprep.subr.mxu0 0.0
        %1093 = vmatpush1.xpose.msra.mxu0 0.0
        %1094 = vmatprep.subr.mxu0 0.0
        %1095 = vmatpush1.xpose.msra.mxu0 0.0
        %1096 = vmatprep.subr.mxu0 0.0
        %1097 = vmatpush1.xpose.msra.mxu0 0.0
        %1098 = vmatprep.subr.mxu0 0.0
        %1099 = vmatpush1.xpose.msra.mxu0 0.0
        %1100 = vmatprep.subr.mxu0 0.0
        %1101 = vmatpush1.xpose.msra.mxu0 0.0
        %1102 = vmatprep.mubr.f32.mxu0 0.0
        %1103 = vmatmul.mubr.f32.gmra.mrb[0].mxu0 %v1033
        %v1104 = vpop.f32.mrb[0].mxu0
        %v1105 = vadd.f32 0.0, %v1104
        %v1106 = vpop.f32.mrb[0].mxu0
        %1107 = vdwg.mxu0
        %v1109 = vsel %vm803, %v799, 0
        %v1112 = vsel %vm803, %v777, 0
        %1114 = vmatprep.subr.mxu0 0.0
        %1115 = vmatpush1.xpose.msra.mxu0 %v1112
        %1116 = vmatprep.subr.mxu0 0.0
        %1117 = vmatpush1.xpose.msra.mxu0 0.0
        %1118 = vmatprep.subr.mxu0 0.0
        %1119 = vmatpush1.xpose.msra.mxu0 0.0
        %1120 = vmatprep.subr.mxu0 0.0
        %1121 = vmatpush1.xpose.msra.mxu0 0.0
        %1122 = vmatprep.subr.mxu0 0.0
        %1123 = vmatpush1.xpose.msra.mxu0 0.0
        %1124 = vmatprep.subr.mxu0 0.0
        %1125 = vmatpush1.xpose.msra.mxu0 0.0
        %1126 = vmatprep.subr.mxu0 0.0
        %1127 = vmatpush1.xpose.msra.mxu0 0.0
        %1128 = vmatprep.subr.mxu0 0.0
        %1129 = vmatpush1.xpose.msra.mxu0 0.0
        %1130 = vmatprep.subr.mxu0 0.0
        %1131 = vmatpush1.xpose.msra.mxu0 0.0
        %1132 = vmatprep.subr.mxu0 0.0
        %1133 = vmatpush1.xpose.msra.mxu0 0.0
        %1134 = vmatprep.subr.mxu0 0.0
        %1135 = vmatpush1.xpose.msra.mxu0 0.0
        %1136 = vmatprep.subr.mxu0 0.0
        %1137 = vmatpush1.xpose.msra.mxu0 0.0
        %1138 = vmatprep.subr.mxu0 0.0
        %1139 = vmatpush1.xpose.msra.mxu0 0.0
        %1140 = vmatprep.subr.mxu0 0.0
        %1141 = vmatpush1.xpose.msra.mxu0 0.0
        %1142 = vmatprep.subr.mxu0 0.0
        %1143 = vmatpush1.xpose.msra.mxu0 0.0
        %1144 = vmatprep.subr.mxu0 0.0
        %1145 = vmatpush1.xpose.msra.mxu0 0.0
        %1146 = vmatprep.subr.mxu0 0.0
        %1147 = vmatpush1.xpose.msra.mxu0 0.0
        %1148 = vmatprep.subr.mxu0 0.0
        %1149 = vmatpush1.xpose.msra.mxu0 0.0
        %1150 = vmatprep.subr.mxu0 0.0
        %1151 = vmatpush1.xpose.msra.mxu0 0.0
        %1152 = vmatprep.subr.mxu0 0.0
        %1153 = vmatpush1.xpose.msra.mxu0 0.0
        %1154 = vmatprep.subr.mxu0 0.0
        %1155 = vmatpush1.xpose.msra.mxu0 0.0
        %1156 = vmatprep.subr.mxu0 0.0
        %1157 = vmatpush1.xpose.msra.mxu0 0.0
        %1158 = vmatprep.subr.mxu0 0.0
        %1159 = vmatpush1.xpose.msra.mxu0 0.0
        %1160 = vmatprep.subr.mxu0 0.0
        %1161 = vmatpush1.xpose.msra.mxu0 0.0
        %1162 = vmatprep.subr.mxu0 0.0
        %1163 = vmatpush1.xpose.msra.mxu0 0.0
        %1164 = vmatprep.subr.mxu0 0.0
        %1165 = vmatpush1.xpose.msra.mxu0 0.0
        %1166 = vmatprep.subr.mxu0 0.0
        %1167 = vmatpush1.xpose.msra.mxu0 0.0
        %1168 = vmatprep.subr.mxu0 0.0
        %1169 = vmatpush1.xpose.msra.mxu0 0.0
        %1170 = vmatprep.subr.mxu0 0.0
        %1171 = vmatpush1.xpose.msra.mxu0 0.0
        %1172 = vmatprep.subr.mxu0 0.0
        %1173 = vmatpush1.xpose.msra.mxu0 0.0
        %1174 = vmatprep.subr.mxu0 0.0
        %1175 = vmatpush1.xpose.msra.mxu0 0.0
        %1176 = vmatprep.subr.mxu0 0.0
        %1177 = vmatpush1.xpose.msra.mxu0 0.0
        %1178 = vmatprep.mubr.f32.mxu0 0.0
        %1179 = vmatmul.mubr.f32.gmra.mrb[0].mxu0 %v1109
        %v1180 = vpop.f32.mrb[0].mxu0
        %v1181 = vadd.f32 0.0, %v1180
        %v1182 = vpop.f32.mrb[0].mxu0
        %1183 = vdwg.mxu0
        %v1185 = vsel %vm803, %v800, 0
        %v1188 = vsel %vm803, %v782, 0
        %1190 = vmatprep.subr.mxu0 0.0
        %1191 = vmatpush1.xpose.msra.mxu0 %v1188
        %1192 = vmatprep.subr.mxu0 0.0
        %1193 = vmatpush1.xpose.msra.mxu0 0.0
        %1194 = vmatprep.subr.mxu0 0.0
        %1195 = vmatpush1.xpose.msra.mxu0 0.0
        %1196 = vmatprep.subr.mxu0 0.0
        %1197 = vmatpush1.xpose.msra.mxu0 0.0
        %1198 = vmatprep.subr.mxu0 0.0
        %1199 = vmatpush1.xpose.msra.mxu0 0.0
        %1200 = vmatprep.subr.mxu0 0.0
        %1201 = vmatpush1.xpose.msra.mxu0 0.0
        %1202 = vmatprep.subr.mxu0 0.0
        %1203 = vmatpush1.xpose.msra.mxu0 0.0
        %1204 = vmatprep.subr.mxu0 0.0
        %1205 = vmatpush1.xpose.msra.mxu0 0.0
        %1206 = vmatprep.subr.mxu0 0.0
        %1207 = vmatpush1.xpose.msra.mxu0 0.0
        %1208 = vmatprep.subr.mxu0 0.0
        %1209 = vmatpush1.xpose.msra.mxu0 0.0
        %1210 = vmatprep.subr.mxu0 0.0
        %1211 = vmatpush1.xpose.msra.mxu0 0.0
        %1212 = vmatprep.subr.mxu0 0.0
        %1213 = vmatpush1.xpose.msra.mxu0 0.0
        %1214 = vmatprep.subr.mxu0 0.0
        %1215 = vmatpush1.xpose.msra.mxu0 0.0
        %1216 = vmatprep.subr.mxu0 0.0
        %1217 = vmatpush1.xpose.msra.mxu0 0.0
        %1218 = vmatprep.subr.mxu0 0.0
        %1219 = vmatpush1.xpose.msra.mxu0 0.0
        %1220 = vmatprep.subr.mxu0 0.0
        %1221 = vmatpush1.xpose.msra.mxu0 0.0
        %1222 = vmatprep.subr.mxu0 0.0
        %1223 = vmatpush1.xpose.msra.mxu0 0.0
        %1224 = vmatprep.subr.mxu0 0.0
        %1225 = vmatpush1.xpose.msra.mxu0 0.0
        %1226 = vmatprep.subr.mxu0 0.0
        %1227 = vmatpush1.xpose.msra.mxu0 0.0
        %1228 = vmatprep.subr.mxu0 0.0
        %1229 = vmatpush1.xpose.msra.mxu0 0.0
        %1230 = vmatprep.subr.mxu0 0.0
        %1231 = vmatpush1.xpose.msra.mxu0 0.0
        %1232 = vmatprep.subr.mxu0 0.0
        %1233 = vmatpush1.xpose.msra.mxu0 0.0
        %1234 = vmatprep.subr.mxu0 0.0
        %1235 = vmatpush1.xpose.msra.mxu0 0.0
        %1236 = vmatprep.subr.mxu0 0.0
        %1237 = vmatpush1.xpose.msra.mxu0 0.0
        %1238 = vmatprep.subr.mxu0 0.0
        %1239 = vmatpush1.xpose.msra.mxu0 0.0
        %1240 = vmatprep.subr.mxu0 0.0
        %1241 = vmatpush1.xpose.msra.mxu0 0.0
        %1242 = vmatprep.subr.mxu0 0.0
        %1243 = vmatpush1.xpose.msra.mxu0 0.0
        %1244 = vmatprep.subr.mxu0 0.0
        %1245 = vmatpush1.xpose.msra.mxu0 0.0
        %1246 = vmatprep.subr.mxu0 0.0
        %1247 = vmatpush1.xpose.msra.mxu0 0.0
        %1248 = vmatprep.subr.mxu0 0.0
        %1249 = vmatpush1.xpose.msra.mxu0 0.0
        %1250 = vmatprep.subr.mxu0 0.0
        %1251 = vmatpush1.xpose.msra.mxu0 0.0
        %1252 = vmatprep.subr.mxu0 0.0
        %1253 = vmatpush1.xpose.msra.mxu0 0.0
        %1254 = vmatprep.mubr.f32.mxu0 0.0
        %1255 = vmatmul.mubr.f32.gmra.mrb[0].mxu0 %v1185
        %v1256 = vpop.f32.mrb[0].mxu0
        %v1257 = vadd.f32 0.0, %v1256
        %v1258 = vpop.f32.mrb[0].mxu0
        %1259 = vdwg.mxu0
        %v1261 = vsel %vm803, %v801, 0
        %v1264 = vsel %vm803, %v787, 0
        %1266 = vmatprep.subr.mxu0 0.0
        %1267 = vmatpush1.xpose.msra.mxu0 %v1264
        %1268 = vmatprep.subr.mxu0 0.0
        %1269 = vmatpush1.xpose.msra.mxu0 0.0
        %1270 = vmatprep.subr.mxu0 0.0
        %1271 = vmatpush1.xpose.msra.mxu0 0.0
        %1272 = vmatprep.subr.mxu0 0.0
        %1273 = vmatpush1.xpose.msra.mxu0 0.0
        %1274 = vmatprep.subr.mxu0 0.0
        %1275 = vmatpush1.xpose.msra.mxu0 0.0
        %1276 = vmatprep.subr.mxu0 0.0
        %1277 = vmatpush1.xpose.msra.mxu0 0.0
        %1278 = vmatprep.subr.mxu0 0.0
        %1279 = vmatpush1.xpose.msra.mxu0 0.0
        %1280 = vmatprep.subr.mxu0 0.0
        %1281 = vmatpush1.xpose.msra.mxu0 0.0
        %1282 = vmatprep.subr.mxu0 0.0
        %1283 = vmatpush1.xpose.msra.mxu0 0.0
        %1284 = vmatprep.subr.mxu0 0.0
        %1285 = vmatpush1.xpose.msra.mxu0 0.0
        %1286 = vmatprep.subr.mxu0 0.0
        %1287 = vmatpush1.xpose.msra.mxu0 0.0
        %1288 = vmatprep.subr.mxu0 0.0
        %1289 = vmatpush1.xpose.msra.mxu0 0.0
        %1290 = vmatprep.subr.mxu0 0.0
        %1291 = vmatpush1.xpose.msra.mxu0 0.0
        %1292 = vmatprep.subr.mxu0 0.0
        %1293 = vmatpush1.xpose.msra.mxu0 0.0
        %1294 = vmatprep.subr.mxu0 0.0
        %1295 = vmatpush1.xpose.msra.mxu0 0.0
        %1296 = vmatprep.subr.mxu0 0.0
        %1297 = vmatpush1.xpose.msra.mxu0 0.0
        %1298 = vmatprep.subr.mxu0 0.0
        %1299 = vmatpush1.xpose.msra.mxu0 0.0
        %1300 = vmatprep.subr.mxu0 0.0
        %1301 = vmatpush1.xpose.msra.mxu0 0.0
        %1302 = vmatprep.subr.mxu0 0.0
        %1303 = vmatpush1.xpose.msra.mxu0 0.0
        %1304 = vmatprep.subr.mxu0 0.0
        %1305 = vmatpush1.xpose.msra.mxu0 0.0
        %1306 = vmatprep.subr.mxu0 0.0
        %1307 = vmatpush1.xpose.msra.mxu0 0.0
        %1308 = vmatprep.subr.mxu0 0.0
        %1309 = vmatpush1.xpose.msra.mxu0 0.0
        %1310 = vmatprep.subr.mxu0 0.0
        %1311 = vmatpush1.xpose.msra.mxu0 0.0
        %1312 = vmatprep.subr.mxu0 0.0
        %1313 = vmatpush1.xpose.msra.mxu0 0.0
        %1314 = vmatprep.subr.mxu0 0.0
        %1315 = vmatpush1.xpose.msra.mxu0 0.0
        %1316 = vmatprep.subr.mxu0 0.0
        %1317 = vmatpush1.xpose.msra.mxu0 0.0
        %1318 = vmatprep.subr.mxu0 0.0
        %1319 = vmatpush1.xpose.msra.mxu0 0.0
        %1320 = vmatprep.subr.mxu0 0.0
        %1321 = vmatpush1.xpose.msra.mxu0 0.0
        %1322 = vmatprep.subr.mxu0 0.0
        %1323 = vmatpush1.xpose.msra.mxu0 0.0
        %1324 = vmatprep.subr.mxu0 0.0
        %1325 = vmatpush1.xpose.msra.mxu0 0.0
        %1326 = vmatprep.subr.mxu0 0.0
        %1327 = vmatpush1.xpose.msra.mxu0 0.0
        %1328 = vmatprep.subr.mxu0 0.0
        %1329 = vmatpush1.xpose.msra.mxu0 0.0
        %1330 = vmatprep.mubr.f32.mxu0 0.0
        %1331 = vmatmul.mubr.f32.gmra.mrb[0].mxu0 %v1261
        %v1332 = vpop.f32.mrb[0].mxu0
        %v1333 = vadd.f32 0.0, %v1332
        %v1334 = vpop.f32.mrb[0].mxu0
        %1335 = vdwg.mxu0
        %v1337 = vsel %vm803, %v802, 0
        %v1340 = vsel %vm803, %v792, 0
        %1342 = vmatprep.subr.mxu0 0.0
        %1343 = vmatpush1.xpose.msra.mxu0 %v1340
        %1344 = vmatprep.subr.mxu0 0.0
        %1345 = vmatpush1.xpose.msra.mxu0 0.0
        %1346 = vmatprep.subr.mxu0 0.0
        %1347 = vmatpush1.xpose.msra.mxu0 0.0
        %1348 = vmatprep.subr.mxu0 0.0
        %1349 = vmatpush1.xpose.msra.mxu0 0.0
        %1350 = vmatprep.subr.mxu0 0.0
        %1351 = vmatpush1.xpose.msra.mxu0 0.0
        %1352 = vmatprep.subr.mxu0 0.0
        %1353 = vmatpush1.xpose.msra.mxu0 0.0
        %1354 = vmatprep.subr.mxu0 0.0
        %1355 = vmatpush1.xpose.msra.mxu0 0.0
        %1356 = vmatprep.subr.mxu0 0.0
        %1357 = vmatpush1.xpose.msra.mxu0 0.0
        %1358 = vmatprep.subr.mxu0 0.0
        %1359 = vmatpush1.xpose.msra.mxu0 0.0
        %1360 = vmatprep.subr.mxu0 0.0
        %1361 = vmatpush1.xpose.msra.mxu0 0.0
        %1362 = vmatprep.subr.mxu0 0.0
        %1363 = vmatpush1.xpose.msra.mxu0 0.0
        %1364 = vmatprep.subr.mxu0 0.0
        %1365 = vmatpush1.xpose.msra.mxu0 0.0
        %1366 = vmatprep.subr.mxu0 0.0
        %1367 = vmatpush1.xpose.msra.mxu0 0.0
        %1368 = vmatprep.subr.mxu0 0.0
        %1369 = vmatpush1.xpose.msra.mxu0 0.0
        %1370 = vmatprep.subr.mxu0 0.0
        %1371 = vmatpush1.xpose.msra.mxu0 0.0
        %1372 = vmatprep.subr.mxu0 0.0
        %1373 = vmatpush1.xpose.msra.mxu0 0.0
        %1374 = vmatprep.subr.mxu0 0.0
        %1375 = vmatpush1.xpose.msra.mxu0 0.0
        %1376 = vmatprep.subr.mxu0 0.0
        %1377 = vmatpush1.xpose.msra.mxu0 0.0
        %1378 = vmatprep.subr.mxu0 0.0
        %1379 = vmatpush1.xpose.msra.mxu0 0.0
        %1380 = vmatprep.subr.mxu0 0.0
        %1381 = vmatpush1.xpose.msra.mxu0 0.0
        %1382 = vmatprep.subr.mxu0 0.0
        %1383 = vmatpush1.xpose.msra.mxu0 0.0
        %1384 = vmatprep.subr.mxu0 0.0
        %1385 = vmatpush1.xpose.msra.mxu0 0.0
        %1386 = vmatprep.subr.mxu0 0.0
        %1387 = vmatpush1.xpose.msra.mxu0 0.0
        %1388 = vmatprep.subr.mxu0 0.0
        %1389 = vmatpush1.xpose.msra.mxu0 0.0
        %1390 = vmatprep.subr.mxu0 0.0
        %1391 = vmatpush1.xpose.msra.mxu0 0.0
        %1392 = vmatprep.subr.mxu0 0.0
        %1393 = vmatpush1.xpose.msra.mxu0 0.0
        %1394 = vmatprep.subr.mxu0 0.0
        %1395 = vmatpush1.xpose.msra.mxu0 0.0
        %1396 = vmatprep.subr.mxu0 0.0
        %1397 = vmatpush1.xpose.msra.mxu0 0.0
        %1398 = vmatprep.subr.mxu0 0.0
        %1399 = vmatpush1.xpose.msra.mxu0 0.0
        %1400 = vmatprep.subr.mxu0 0.0
        %1401 = vmatpush1.xpose.msra.mxu0 0.0
        %1402 = vmatprep.subr.mxu0 0.0
        %1403 = vmatpush1.xpose.msra.mxu0 0.0
        %1404 = vmatprep.subr.mxu0 0.0
        %1405 = vmatpush1.xpose.msra.mxu0 0.0
        %1406 = vmatprep.mubr.f32.mxu0 0.0
        %1407 = vmatmul.mubr.f32.gmra.mrb[0].mxu0 %v1337
        %v1408 = vpop.f32.mrb[0].mxu0
        %v1409 = vadd.f32 0.0, %v1408
        %v1410 = vpop.f32.mrb[0].mxu0
        %1411 = vdwg.mxu0
        %vm1412 = vcmask 60416
        %1413 = vst.msk [vmem:[%s338] sm:$0xf] %vm1412, %v877
        %1414 = vst.msk [vmem:[%s338 + $0x4] sm:$0xf] %vm1412, %v953
        %1415 = vst.msk [vmem:[%s338 + $0x8] sm:$0xf] %vm1412, %v1029
        %1416 = vst.msk [vmem:[%s338 + $0xc] sm:$0xf] %vm1412, %v1105
        %1417 = vst.msk [vmem:[%s338 + $0x10] sm:$0xf] %vm1412, %v1181
        %1418 = vst.msk [vmem:[%s338 + $0x14] sm:$0xf] %vm1412, %v1257
        %1419 = vst.msk [vmem:[%s338 + $0x18] sm:$0xf] %vm1412, %v1333
        %1420 = vst.msk [vmem:[%s338 + $0x1c] sm:$0xf] %vm1412, %v1409
        %s1421 = scalar_lea.vmem %s348, 32
        %v1422 = vld [vmem:[%s1421] sm:$0xf]
        %v1423 = vld [vmem:[%s1421 + $0x4] sm:$0xf]
        %v1424 = vld [vmem:[%s1421 + $0x8] sm:$0xf]
        %v1425 = vld [vmem:[%s1421 + $0xc] sm:$0xf]
        %v1426 = vld [vmem:[%s1421 + $0x10] sm:$0xf]
        %v1427 = vld [vmem:[%s1421 + $0x14] sm:$0xf]
        %v1428 = vld [vmem:[%s1421 + $0x18] sm:$0xf]
        %v1429 = vld [vmem:[%s1421 + $0x1c] sm:$0xf]
        %1430 = vrot.lane.b32.xlu0 %v757, 112
        %v1431 = vpop.permute.xlu0 %1430
        %v1433 = vsel %vm803, %v1422, 0
        %v1435 = vsel %vm803, %v1431, 0
        %1437 = vmatprep.subr.mxu0 0.0
        %1438 = vmatpush1.xpose.msra.mxu0 %v1435
        %1439 = vmatprep.subr.mxu0 0.0
        %1440 = vmatpush1.xpose.msra.mxu0 0.0
        %1441 = vmatprep.subr.mxu0 0.0
        %1442 = vmatpush1.xpose.msra.mxu0 0.0
        %1443 = vmatprep.subr.mxu0 0.0
        %1444 = vmatpush1.xpose.msra.mxu0 0.0
        %1445 = vmatprep.subr.mxu0 0.0
        %1446 = vmatpush1.xpose.msra.mxu0 0.0
        %1447 = vmatprep.subr.mxu0 0.0
        %1448 = vmatpush1.xpose.msra.mxu0 0.0
        %1449 = vmatprep.subr.mxu0 0.0
        %1450 = vmatpush1.xpose.msra.mxu0 0.0
        %1451 = vmatprep.subr.mxu0 0.0
        %1452 = vmatpush1.xpose.msra.mxu0 0.0
        %1453 = vmatprep.subr.mxu0 0.0
        %1454 = vmatpush1.xpose.msra.mxu0 0.0
        %1455 = vmatprep.subr.mxu0 0.0
        %1456 = vmatpush1.xpose.msra.mxu0 0.0
        %1457 = vmatprep.subr.mxu0 0.0
        %1458 = vmatpush1.xpose.msra.mxu0 0.0
        %1459 = vmatprep.subr.mxu0 0.0
        %1460 = vmatpush1.xpose.msra.mxu0 0.0
        %1461 = vmatprep.subr.mxu0 0.0
        %1462 = vmatpush1.xpose.msra.mxu0 0.0
        %1463 = vmatprep.subr.mxu0 0.0
        %1464 = vmatpush1.xpose.msra.mxu0 0.0
        %1465 = vmatprep.subr.mxu0 0.0
        %1466 = vmatpush1.xpose.msra.mxu0 0.0
        %1467 = vmatprep.subr.mxu0 0.0
        %1468 = vmatpush1.xpose.msra.mxu0 0.0
        %1469 = vmatprep.subr.mxu0 0.0
        %1470 = vmatpush1.xpose.msra.mxu0 0.0
        %1471 = vmatprep.subr.mxu0 0.0
        %1472 = vmatpush1.xpose.msra.mxu0 0.0
        %1473 = vmatprep.subr.mxu0 0.0
        %1474 = vmatpush1.xpose.msra.mxu0 0.0
        %1475 = vmatprep.subr.mxu0 0.0
        %1476 = vmatpush1.xpose.msra.mxu0 0.0
        %1477 = vmatprep.subr.mxu0 0.0
        %1478 = vmatpush1.xpose.msra.mxu0 0.0
        %1479 = vmatprep.subr.mxu0 0.0
        %1480 = vmatpush1.xpose.msra.mxu0 0.0
        %1481 = vmatprep.subr.mxu0 0.0
        %1482 = vmatpush1.xpose.msra.mxu0 0.0
        %1483 = vmatprep.subr.mxu0 0.0
        %1484 = vmatpush1.xpose.msra.mxu0 0.0
        %1485 = vmatprep.subr.mxu0 0.0
        %1486 = vmatpush1.xpose.msra.mxu0 0.0
        %1487 = vmatprep.subr.mxu0 0.0
        %1488 = vmatpush1.xpose.msra.mxu0 0.0
        %1489 = vmatprep.subr.mxu0 0.0
        %1490 = vmatpush1.xpose.msra.mxu0 0.0
        %1491 = vmatprep.subr.mxu0 0.0
        %1492 = vmatpush1.xpose.msra.mxu0 0.0
        %1493 = vmatprep.subr.mxu0 0.0
        %1494 = vmatpush1.xpose.msra.mxu0 0.0
        %1495 = vmatprep.subr.mxu0 0.0
        %1496 = vmatpush1.xpose.msra.mxu0 0.0
        %1497 = vmatprep.subr.mxu0 0.0
        %1498 = vmatpush1.xpose.msra.mxu0 0.0
        %1499 = vmatprep.subr.mxu0 0.0
        %1500 = vmatpush1.xpose.msra.mxu0 0.0
        %1501 = vmatprep.mubr.f32.mxu0 0.0
        %1502 = vmatmul.mubr.f32.gmra.mrb[0].mxu0 %v1433
        %v1503 = vpop.f32.mrb[0].mxu0
        %v1504 = vadd.f32 0.0, %v1503
        %v1505 = vpop.f32.mrb[0].mxu0
        %1506 = vdwg.mxu0
        %1507 = vrot.lane.b32.xlu0 %v762, 112
        %v1508 = vpop.permute.xlu0 %1507
        %v1510 = vsel %vm803, %v1423, 0
        %v1512 = vsel %vm803, %v1508, 0
        %1514 = vmatprep.subr.mxu0 0.0
        %1515 = vmatpush1.xpose.msra.mxu0 %v1512
        %1516 = vmatprep.subr.mxu0 0.0
        %1517 = vmatpush1.xpose.msra.mxu0 0.0
        %1518 = vmatprep.subr.mxu0 0.0
        %1519 = vmatpush1.xpose.msra.mxu0 0.0
        %1520 = vmatprep.subr.mxu0 0.0
        %1521 = vmatpush1.xpose.msra.mxu0 0.0
        %1522 = vmatprep.subr.mxu0 0.0
        %1523 = vmatpush1.xpose.msra.mxu0 0.0
        %1524 = vmatprep.subr.mxu0 0.0
        %1525 = vmatpush1.xpose.msra.mxu0 0.0
        %1526 = vmatprep.subr.mxu0 0.0
        %1527 = vmatpush1.xpose.msra.mxu0 0.0
        %1528 = vmatprep.subr.mxu0 0.0
        %1529 = vmatpush1.xpose.msra.mxu0 0.0
        %1530 = vmatprep.subr.mxu0 0.0
        %1531 = vmatpush1.xpose.msra.mxu0 0.0
        %1532 = vmatprep.subr.mxu0 0.0
        %1533 = vmatpush1.xpose.msra.mxu0 0.0
        %1534 = vmatprep.subr.mxu0 0.0
        %1535 = vmatpush1.xpose.msra.mxu0 0.0
        %1536 = vmatprep.subr.mxu0 0.0
        %1537 = vmatpush1.xpose.msra.mxu0 0.0
        %1538 = vmatprep.subr.mxu0 0.0
        %1539 = vmatpush1.xpose.msra.mxu0 0.0
        %1540 = vmatprep.subr.mxu0 0.0
        %1541 = vmatpush1.xpose.msra.mxu0 0.0
        %1542 = vmatprep.subr.mxu0 0.0
        %1543 = vmatpush1.xpose.msra.mxu0 0.0
        %1544 = vmatprep.subr.mxu0 0.0
        %1545 = vmatpush1.xpose.msra.mxu0 0.0
        %1546 = vmatprep.subr.mxu0 0.0
        %1547 = vmatpush1.xpose.msra.mxu0 0.0
        %1548 = vmatprep.subr.mxu0 0.0
        %1549 = vmatpush1.xpose.msra.mxu0 0.0
        %1550 = vmatprep.subr.mxu0 0.0
        %1551 = vmatpush1.xpose.msra.mxu0 0.0
        %1552 = vmatprep.subr.mxu0 0.0
        %1553 = vmatpush1.xpose.msra.mxu0 0.0
        %1554 = vmatprep.subr.mxu0 0.0
        %1555 = vmatpush1.xpose.msra.mxu0 0.0
        %1556 = vmatprep.subr.mxu0 0.0
        %1557 = vmatpush1.xpose.msra.mxu0 0.0
        %1558 = vmatprep.subr.mxu0 0.0
        %1559 = vmatpush1.xpose.msra.mxu0 0.0
        %1560 = vmatprep.subr.mxu0 0.0
        %1561 = vmatpush1.xpose.msra.mxu0 0.0
        %1562 = vmatprep.subr.mxu0 0.0
        %1563 = vmatpush1.xpose.msra.mxu0 0.0
        %1564 = vmatprep.subr.mxu0 0.0
        %1565 = vmatpush1.xpose.msra.mxu0 0.0
        %1566 = vmatprep.subr.mxu0 0.0
        %1567 = vmatpush1.xpose.msra.mxu0 0.0
        %1568 = vmatprep.subr.mxu0 0.0
        %1569 = vmatpush1.xpose.msra.mxu0 0.0
        %1570 = vmatprep.subr.mxu0 0.0
        %1571 = vmatpush1.xpose.msra.mxu0 0.0
        %1572 = vmatprep.subr.mxu0 0.0
        %1573 = vmatpush1.xpose.msra.mxu0 0.0
        %1574 = vmatprep.subr.mxu0 0.0
        %1575 = vmatpush1.xpose.msra.mxu0 0.0
        %1576 = vmatprep.subr.mxu0 0.0
        %1577 = vmatpush1.xpose.msra.mxu0 0.0
        %1578 = vmatprep.mubr.f32.mxu0 0.0
        %1579 = vmatmul.mubr.f32.gmra.mrb[0].mxu0 %v1510
        %v1580 = vpop.f32.mrb[0].mxu0
        %v1581 = vadd.f32 0.0, %v1580
        %v1582 = vpop.f32.mrb[0].mxu0
        %1583 = vdwg.mxu0
        %1584 = vrot.lane.b32.xlu0 %v767, 112
        %v1585 = vpop.permute.xlu0 %1584
        %v1587 = vsel %vm803, %v1424, 0
        %v1589 = vsel %vm803, %v1585, 0
        %1591 = vmatprep.subr.mxu0 0.0
        %1592 = vmatpush1.xpose.msra.mxu0 %v1589
        %1593 = vmatprep.subr.mxu0 0.0
        %1594 = vmatpush1.xpose.msra.mxu0 0.0
        %1595 = vmatprep.subr.mxu0 0.0
        %1596 = vmatpush1.xpose.msra.mxu0 0.0
        %1597 = vmatprep.subr.mxu0 0.0
        %1598 = vmatpush1.xpose.msra.mxu0 0.0
        %1599 = vmatprep.subr.mxu0 0.0
        %1600 = vmatpush1.xpose.msra.mxu0 0.0
        %1601 = vmatprep.subr.mxu0 0.0
        %1602 = vmatpush1.xpose.msra.mxu0 0.0
        %1603 = vmatprep.subr.mxu0 0.0
        %1604 = vmatpush1.xpose.msra.mxu0 0.0
        %1605 = vmatprep.subr.mxu0 0.0
        %1606 = vmatpush1.xpose.msra.mxu0 0.0
        %1607 = vmatprep.subr.mxu0 0.0
        %1608 = vmatpush1.xpose.msra.mxu0 0.0
        %1609 = vmatprep.subr.mxu0 0.0
        %1610 = vmatpush1.xpose.msra.mxu0 0.0
        %1611 = vmatprep.subr.mxu0 0.0
        %1612 = vmatpush1.xpose.msra.mxu0 0.0
        %1613 = vmatprep.subr.mxu0 0.0
        %1614 = vmatpush1.xpose.msra.mxu0 0.0
        %1615 = vmatprep.subr.mxu0 0.0
        %1616 = vmatpush1.xpose.msra.mxu0 0.0
        %1617 = vmatprep.subr.mxu0 0.0
        %1618 = vmatpush1.xpose.msra.mxu0 0.0
        %1619 = vmatprep.subr.mxu0 0.0
        %1620 = vmatpush1.xpose.msra.mxu0 0.0
        %1621 = vmatprep.subr.mxu0 0.0
        %1622 = vmatpush1.xpose.msra.mxu0 0.0
        %1623 = vmatprep.subr.mxu0 0.0
        %1624 = vmatpush1.xpose.msra.mxu0 0.0
        %1625 = vmatprep.subr.mxu0 0.0
        %1626 = vmatpush1.xpose.msra.mxu0 0.0
        %1627 = vmatprep.subr.mxu0 0.0
        %1628 = vmatpush1.xpose.msra.mxu0 0.0
        %1629 = vmatprep.subr.mxu0 0.0
        %1630 = vmatpush1.xpose.msra.mxu0 0.0
        %1631 = vmatprep.subr.mxu0 0.0
        %1632 = vmatpush1.xpose.msra.mxu0 0.0
        %1633 = vmatprep.subr.mxu0 0.0
        %1634 = vmatpush1.xpose.msra.mxu0 0.0
        %1635 = vmatprep.subr.mxu0 0.0
        %1636 = vmatpush1.xpose.msra.mxu0 0.0
        %1637 = vmatprep.subr.mxu0 0.0
        %1638 = vmatpush1.xpose.msra.mxu0 0.0
        %1639 = vmatprep.subr.mxu0 0.0
        %1640 = vmatpush1.xpose.msra.mxu0 0.0
        %1641 = vmatprep.subr.mxu0 0.0
        %1642 = vmatpush1.xpose.msra.mxu0 0.0
        %1643 = vmatprep.subr.mxu0 0.0
        %1644 = vmatpush1.xpose.msra.mxu0 0.0
        %1645 = vmatprep.subr.mxu0 0.0
        %1646 = vmatpush1.xpose.msra.mxu0 0.0
        %1647 = vmatprep.subr.mxu0 0.0
        %1648 = vmatpush1.xpose.msra.mxu0 0.0
        %1649 = vmatprep.subr.mxu0 0.0
        %1650 = vmatpush1.xpose.msra.mxu0 0.0
        %1651 = vmatprep.subr.mxu0 0.0
        %1652 = vmatpush1.xpose.msra.mxu0 0.0
        %1653 = vmatprep.subr.mxu0 0.0
        %1654 = vmatpush1.xpose.msra.mxu0 0.0
        %1655 = vmatprep.mubr.f32.mxu0 0.0
        %1656 = vmatmul.mubr.f32.gmra.mrb[0].mxu0 %v1587
        %v1657 = vpop.f32.mrb[0].mxu0
        %v1658 = vadd.f32 0.0, %v1657
        %v1659 = vpop.f32.mrb[0].mxu0
        %1660 = vdwg.mxu0
        %1661 = vrot.lane.b32.xlu0 %v772, 112
        %v1662 = vpop.permute.xlu0 %1661
        %v1664 = vsel %vm803, %v1425, 0
        %v1666 = vsel %vm803, %v1662, 0
        %1668 = vmatprep.subr.mxu0 0.0
        %1669 = vmatpush1.xpose.msra.mxu0 %v1666
        %1670 = vmatprep.subr.mxu0 0.0
        %1671 = vmatpush1.xpose.msra.mxu0 0.0
        %1672 = vmatprep.subr.mxu0 0.0
        %1673 = vmatpush1.xpose.msra.mxu0 0.0
        %1674 = vmatprep.subr.mxu0 0.0
        %1675 = vmatpush1.xpose.msra.mxu0 0.0
        %1676 = vmatprep.subr.mxu0 0.0
        %1677 = vmatpush1.xpose.msra.mxu0 0.0
        %1678 = vmatprep.subr.mxu0 0.0
        %1679 = vmatpush1.xpose.msra.mxu0 0.0
        %1680 = vmatprep.subr.mxu0 0.0
        %1681 = vmatpush1.xpose.msra.mxu0 0.0
        %1682 = vmatprep.subr.mxu0 0.0
        %1683 = vmatpush1.xpose.msra.mxu0 0.0
        %1684 = vmatprep.subr.mxu0 0.0
        %1685 = vmatpush1.xpose.msra.mxu0 0.0
        %1686 = vmatprep.subr.mxu0 0.0
        %1687 = vmatpush1.xpose.msra.mxu0 0.0
        %1688 = vmatprep.subr.mxu0 0.0
        %1689 = vmatpush1.xpose.msra.mxu0 0.0
        %1690 = vmatprep.subr.mxu0 0.0
        %1691 = vmatpush1.xpose.msra.mxu0 0.0
        %1692 = vmatprep.subr.mxu0 0.0
        %1693 = vmatpush1.xpose.msra.mxu0 0.0
        %1694 = vmatprep.subr.mxu0 0.0
        %1695 = vmatpush1.xpose.msra.mxu0 0.0
        %1696 = vmatprep.subr.mxu0 0.0
        %1697 = vmatpush1.xpose.msra.mxu0 0.0
        %1698 = vmatprep.subr.mxu0 0.0
        %1699 = vmatpush1.xpose.msra.mxu0 0.0
        %1700 = vmatprep.subr.mxu0 0.0
        %1701 = vmatpush1.xpose.msra.mxu0 0.0
        %1702 = vmatprep.subr.mxu0 0.0
        %1703 = vmatpush1.xpose.msra.mxu0 0.0
        %1704 = vmatprep.subr.mxu0 0.0
        %1705 = vmatpush1.xpose.msra.mxu0 0.0
        %1706 = vmatprep.subr.mxu0 0.0
        %1707 = vmatpush1.xpose.msra.mxu0 0.0
        %1708 = vmatprep.subr.mxu0 0.0
        %1709 = vmatpush1.xpose.msra.mxu0 0.0
        %1710 = vmatprep.subr.mxu0 0.0
        %1711 = vmatpush1.xpose.msra.mxu0 0.0
        %1712 = vmatprep.subr.mxu0 0.0
        %1713 = vmatpush1.xpose.msra.mxu0 0.0
        %1714 = vmatprep.subr.mxu0 0.0
        %1715 = vmatpush1.xpose.msra.mxu0 0.0
        %1716 = vmatprep.subr.mxu0 0.0
        %1717 = vmatpush1.xpose.msra.mxu0 0.0
        %1718 = vmatprep.subr.mxu0 0.0
        %1719 = vmatpush1.xpose.msra.mxu0 0.0
        %1720 = vmatprep.subr.mxu0 0.0
        %1721 = vmatpush1.xpose.msra.mxu0 0.0
        %1722 = vmatprep.subr.mxu0 0.0
        %1723 = vmatpush1.xpose.msra.mxu0 0.0
        %1724 = vmatprep.subr.mxu0 0.0
        %1725 = vmatpush1.xpose.msra.mxu0 0.0
        %1726 = vmatprep.subr.mxu0 0.0
        %1727 = vmatpush1.xpose.msra.mxu0 0.0
        %1728 = vmatprep.subr.mxu0 0.0
        %1729 = vmatpush1.xpose.msra.mxu0 0.0
        %1730 = vmatprep.subr.mxu0 0.0
        %1731 = vmatpush1.xpose.msra.mxu0 0.0
        %1732 = vmatprep.mubr.f32.mxu0 0.0
        %1733 = vmatmul.mubr.f32.gmra.mrb[0].mxu0 %v1664
        %v1734 = vpop.f32.mrb[0].mxu0
        %v1735 = vadd.f32 0.0, %v1734
        %v1736 = vpop.f32.mrb[0].mxu0
        %1737 = vdwg.mxu0
        %1738 = vrot.lane.b32.xlu0 %v777, 112
        %v1739 = vpop.permute.xlu0 %1738
        %v1741 = vsel %vm803, %v1426, 0
        %v1743 = vsel %vm803, %v1739, 0
        %1745 = vmatprep.subr.mxu0 0.0
        %1746 = vmatpush1.xpose.msra.mxu0 %v1743
        %1747 = vmatprep.subr.mxu0 0.0
        %1748 = vmatpush1.xpose.msra.mxu0 0.0
        %1749 = vmatprep.subr.mxu0 0.0
        %1750 = vmatpush1.xpose.msra.mxu0 0.0
        %1751 = vmatprep.subr.mxu0 0.0
        %1752 = vmatpush1.xpose.msra.mxu0 0.0
        %1753 = vmatprep.subr.mxu0 0.0
        %1754 = vmatpush1.xpose.msra.mxu0 0.0
        %1755 = vmatprep.subr.mxu0 0.0
        %1756 = vmatpush1.xpose.msra.mxu0 0.0
        %1757 = vmatprep.subr.mxu0 0.0
        %1758 = vmatpush1.xpose.msra.mxu0 0.0
        %1759 = vmatprep.subr.mxu0 0.0
        %1760 = vmatpush1.xpose.msra.mxu0 0.0
        %1761 = vmatprep.subr.mxu0 0.0
        %1762 = vmatpush1.xpose.msra.mxu0 0.0
        %1763 = vmatprep.subr.mxu0 0.0
        %1764 = vmatpush1.xpose.msra.mxu0 0.0
        %1765 = vmatprep.subr.mxu0 0.0
        %1766 = vmatpush1.xpose.msra.mxu0 0.0
        %1767 = vmatprep.subr.mxu0 0.0
        %1768 = vmatpush1.xpose.msra.mxu0 0.0
        %1769 = vmatprep.subr.mxu0 0.0
        %1770 = vmatpush1.xpose.msra.mxu0 0.0
        %1771 = vmatprep.subr.mxu0 0.0
        %1772 = vmatpush1.xpose.msra.mxu0 0.0
        %1773 = vmatprep.subr.mxu0 0.0
        %1774 = vmatpush1.xpose.msra.mxu0 0.0
        %1775 = vmatprep.subr.mxu0 0.0
        %1776 = vmatpush1.xpose.msra.mxu0 0.0
        %1777 = vmatprep.subr.mxu0 0.0
        %1778 = vmatpush1.xpose.msra.mxu0 0.0
        %1779 = vmatprep.subr.mxu0 0.0
        %1780 = vmatpush1.xpose.msra.mxu0 0.0
        %1781 = vmatprep.subr.mxu0 0.0
        %1782 = vmatpush1.xpose.msra.mxu0 0.0
        %1783 = vmatprep.subr.mxu0 0.0
        %1784 = vmatpush1.xpose.msra.mxu0 0.0
        %1785 = vmatprep.subr.mxu0 0.0
        %1786 = vmatpush1.xpose.msra.mxu0 0.0
        %1787 = vmatprep.subr.mxu0 0.0
        %1788 = vmatpush1.xpose.msra.mxu0 0.0
        %1789 = vmatprep.subr.mxu0 0.0
        %1790 = vmatpush1.xpose.msra.mxu0 0.0
        %1791 = vmatprep.subr.mxu0 0.0
        %1792 = vmatpush1.xpose.msra.mxu0 0.0
        %1793 = vmatprep.subr.mxu0 0.0
        %1794 = vmatpush1.xpose.msra.mxu0 0.0
        %1795 = vmatprep.subr.mxu0 0.0
        %1796 = vmatpush1.xpose.msra.mxu0 0.0
        %1797 = vmatprep.subr.mxu0 0.0
        %1798 = vmatpush1.xpose.msra.mxu0 0.0
        %1799 = vmatprep.subr.mxu0 0.0
        %1800 = vmatpush1.xpose.msra.mxu0 0.0
        %1801 = vmatprep.subr.mxu0 0.0
        %1802 = vmatpush1.xpose.msra.mxu0 0.0
        %1803 = vmatprep.subr.mxu0 0.0
        %1804 = vmatpush1.xpose.msra.mxu0 0.0
        %1805 = vmatprep.subr.mxu0 0.0
        %1806 = vmatpush1.xpose.msra.mxu0 0.0
        %1807 = vmatprep.subr.mxu0 0.0
        %1808 = vmatpush1.xpose.msra.mxu0 0.0
        %1809 = vmatprep.mubr.f32.mxu0 0.0
        %1810 = vmatmul.mubr.f32.gmra.mrb[0].mxu0 %v1741
        %v1811 = vpop.f32.mrb[0].mxu0
        %v1812 = vadd.f32 0.0, %v1811
        %v1813 = vpop.f32.mrb[0].mxu0
        %1814 = vdwg.mxu0
        %1815 = vrot.lane.b32.xlu0 %v782, 112
        %v1816 = vpop.permute.xlu0 %1815
        %v1818 = vsel %vm803, %v1427, 0
        %v1820 = vsel %vm803, %v1816, 0
        %1822 = vmatprep.subr.mxu0 0.0
        %1823 = vmatpush1.xpose.msra.mxu0 %v1820
        %1824 = vmatprep.subr.mxu0 0.0
        %1825 = vmatpush1.xpose.msra.mxu0 0.0
        %1826 = vmatprep.subr.mxu0 0.0
        %1827 = vmatpush1.xpose.msra.mxu0 0.0
        %1828 = vmatprep.subr.mxu0 0.0
        %1829 = vmatpush1.xpose.msra.mxu0 0.0
        %1830 = vmatprep.subr.mxu0 0.0
        %1831 = vmatpush1.xpose.msra.mxu0 0.0
        %1832 = vmatprep.subr.mxu0 0.0
        %1833 = vmatpush1.xpose.msra.mxu0 0.0
        %1834 = vmatprep.subr.mxu0 0.0
        %1835 = vmatpush1.xpose.msra.mxu0 0.0
        %1836 = vmatprep.subr.mxu0 0.0
        %1837 = vmatpush1.xpose.msra.mxu0 0.0
        %1838 = vmatprep.subr.mxu0 0.0
        %1839 = vmatpush1.xpose.msra.mxu0 0.0
        %1840 = vmatprep.subr.mxu0 0.0
        %1841 = vmatpush1.xpose.msra.mxu0 0.0
        %1842 = vmatprep.subr.mxu0 0.0
        %1843 = vmatpush1.xpose.msra.mxu0 0.0
        %1844 = vmatprep.subr.mxu0 0.0
        %1845 = vmatpush1.xpose.msra.mxu0 0.0
        %1846 = vmatprep.subr.mxu0 0.0
        %1847 = vmatpush1.xpose.msra.mxu0 0.0
        %1848 = vmatprep.subr.mxu0 0.0
        %1849 = vmatpush1.xpose.msra.mxu0 0.0
        %1850 = vmatprep.subr.mxu0 0.0
        %1851 = vmatpush1.xpose.msra.mxu0 0.0
        %1852 = vmatprep.subr.mxu0 0.0
        %1853 = vmatpush1.xpose.msra.mxu0 0.0
        %1854 = vmatprep.subr.mxu0 0.0
        %1855 = vmatpush1.xpose.msra.mxu0 0.0
        %1856 = vmatprep.subr.mxu0 0.0
        %1857 = vmatpush1.xpose.msra.mxu0 0.0
        %1858 = vmatprep.subr.mxu0 0.0
        %1859 = vmatpush1.xpose.msra.mxu0 0.0
        %1860 = vmatprep.subr.mxu0 0.0
        %1861 = vmatpush1.xpose.msra.mxu0 0.0
        %1862 = vmatprep.subr.mxu0 0.0
        %1863 = vmatpush1.xpose.msra.mxu0 0.0
        %1864 = vmatprep.subr.mxu0 0.0
        %1865 = vmatpush1.xpose.msra.mxu0 0.0
        %1866 = vmatprep.subr.mxu0 0.0
        %1867 = vmatpush1.xpose.msra.mxu0 0.0
        %1868 = vmatprep.subr.mxu0 0.0
        %1869 = vmatpush1.xpose.msra.mxu0 0.0
        %1870 = vmatprep.subr.mxu0 0.0
        %1871 = vmatpush1.xpose.msra.mxu0 0.0
        %1872 = vmatprep.subr.mxu0 0.0
        %1873 = vmatpush1.xpose.msra.mxu0 0.0
        %1874 = vmatprep.subr.mxu0 0.0
        %1875 = vmatpush1.xpose.msra.mxu0 0.0
        %1876 = vmatprep.subr.mxu0 0.0
        %1877 = vmatpush1.xpose.msra.mxu0 0.0
        %1878 = vmatprep.subr.mxu0 0.0
        %1879 = vmatpush1.xpose.msra.mxu0 0.0
        %1880 = vmatprep.subr.mxu0 0.0
        %1881 = vmatpush1.xpose.msra.mxu0 0.0
        %1882 = vmatprep.subr.mxu0 0.0
        %1883 = vmatpush1.xpose.msra.mxu0 0.0
        %1884 = vmatprep.subr.mxu0 0.0
        %1885 = vmatpush1.xpose.msra.mxu0 0.0
        %1886 = vmatprep.mubr.f32.mxu0 0.0
        %1887 = vmatmul.mubr.f32.gmra.mrb[0].mxu0 %v1818
        %v1888 = vpop.f32.mrb[0].mxu0
        %v1889 = vadd.f32 0.0, %v1888
        %v1890 = vpop.f32.mrb[0].mxu0
        %1891 = vdwg.mxu0
        %1892 = vrot.lane.b32.xlu0 %v787, 112
        %v1893 = vpop.permute.xlu0 %1892
        %v1895 = vsel %vm803, %v1428, 0
        %v1897 = vsel %vm803, %v1893, 0
        %1899 = vmatprep.subr.mxu0 0.0
        %1900 = vmatpush1.xpose.msra.mxu0 %v1897
        %1901 = vmatprep.subr.mxu0 0.0
        %1902 = vmatpush1.xpose.msra.mxu0 0.0
        %1903 = vmatprep.subr.mxu0 0.0
        %1904 = vmatpush1.xpose.msra.mxu0 0.0
        %1905 = vmatprep.subr.mxu0 0.0
        %1906 = vmatpush1.xpose.msra.mxu0 0.0
        %1907 = vmatprep.subr.mxu0 0.0
        %1908 = vmatpush1.xpose.msra.mxu0 0.0
        %1909 = vmatprep.subr.mxu0 0.0
        %1910 = vmatpush1.xpose.msra.mxu0 0.0
        %1911 = vmatprep.subr.mxu0 0.0
        %1912 = vmatpush1.xpose.msra.mxu0 0.0
        %1913 = vmatprep.subr.mxu0 0.0
        %1914 = vmatpush1.xpose.msra.mxu0 0.0
        %1915 = vmatprep.subr.mxu0 0.0
        %1916 = vmatpush1.xpose.msra.mxu0 0.0
        %1917 = vmatprep.subr.mxu0 0.0
        %1918 = vmatpush1.xpose.msra.mxu0 0.0
        %1919 = vmatprep.subr.mxu0 0.0
        %1920 = vmatpush1.xpose.msra.mxu0 0.0
        %1921 = vmatprep.subr.mxu0 0.0
        %1922 = vmatpush1.xpose.msra.mxu0 0.0
        %1923 = vmatprep.subr.mxu0 0.0
        %1924 = vmatpush1.xpose.msra.mxu0 0.0
        %1925 = vmatprep.subr.mxu0 0.0
        %1926 = vmatpush1.xpose.msra.mxu0 0.0
        %1927 = vmatprep.subr.mxu0 0.0
        %1928 = vmatpush1.xpose.msra.mxu0 0.0
        %1929 = vmatprep.subr.mxu0 0.0
        %1930 = vmatpush1.xpose.msra.mxu0 0.0
        %1931 = vmatprep.subr.mxu0 0.0
        %1932 = vmatpush1.xpose.msra.mxu0 0.0
        %1933 = vmatprep.subr.mxu0 0.0
        %1934 = vmatpush1.xpose.msra.mxu0 0.0
        %1935 = vmatprep.subr.mxu0 0.0
        %1936 = vmatpush1.xpose.msra.mxu0 0.0
        %1937 = vmatprep.subr.mxu0 0.0
        %1938 = vmatpush1.xpose.msra.mxu0 0.0
        %1939 = vmatprep.subr.mxu0 0.0
        %1940 = vmatpush1.xpose.msra.mxu0 0.0
        %1941 = vmatprep.subr.mxu0 0.0
        %1942 = vmatpush1.xpose.msra.mxu0 0.0
        %1943 = vmatprep.subr.mxu0 0.0
        %1944 = vmatpush1.xpose.msra.mxu0 0.0
        %1945 = vmatprep.subr.mxu0 0.0
        %1946 = vmatpush1.xpose.msra.mxu0 0.0
        %1947 = vmatprep.subr.mxu0 0.0
        %1948 = vmatpush1.xpose.msra.mxu0 0.0
        %1949 = vmatprep.subr.mxu0 0.0
        %1950 = vmatpush1.xpose.msra.mxu0 0.0
        %1951 = vmatprep.subr.mxu0 0.0
        %1952 = vmatpush1.xpose.msra.mxu0 0.0
        %1953 = vmatprep.subr.mxu0 0.0
        %1954 = vmatpush1.xpose.msra.mxu0 0.0
        %1955 = vmatprep.subr.mxu0 0.0
        %1956 = vmatpush1.xpose.msra.mxu0 0.0
        %1957 = vmatprep.subr.mxu0 0.0
        %1958 = vmatpush1.xpose.msra.mxu0 0.0
        %1959 = vmatprep.subr.mxu0 0.0
        %1960 = vmatpush1.xpose.msra.mxu0 0.0
        %1961 = vmatprep.subr.mxu0 0.0
        %1962 = vmatpush1.xpose.msra.mxu0 0.0
        %1963 = vmatprep.mubr.f32.mxu0 0.0
        %1964 = vmatmul.mubr.f32.gmra.mrb[0].mxu0 %v1895
        %v1965 = vpop.f32.mrb[0].mxu0
        %v1966 = vadd.f32 0.0, %v1965
        %v1967 = vpop.f32.mrb[0].mxu0
        %1968 = vdwg.mxu0
        %1969 = vrot.lane.b32.xlu0 %v792, 112
        %v1970 = vpop.permute.xlu0 %1969
        %v1972 = vsel %vm803, %v1429, 0
        %v1974 = vsel %vm803, %v1970, 0
        %1976 = vmatprep.subr.mxu0 0.0
        %1977 = vmatpush1.xpose.msra.mxu0 %v1974
        %1978 = vmatprep.subr.mxu0 0.0
        %1979 = vmatpush1.xpose.msra.mxu0 0.0
        %1980 = vmatprep.subr.mxu0 0.0
        %1981 = vmatpush1.xpose.msra.mxu0 0.0
        %1982 = vmatprep.subr.mxu0 0.0
        %1983 = vmatpush1.xpose.msra.mxu0 0.0
        %1984 = vmatprep.subr.mxu0 0.0
        %1985 = vmatpush1.xpose.msra.mxu0 0.0
        %1986 = vmatprep.subr.mxu0 0.0
        %1987 = vmatpush1.xpose.msra.mxu0 0.0
        %1988 = vmatprep.subr.mxu0 0.0
        %1989 = vmatpush1.xpose.msra.mxu0 0.0
        %1990 = vmatprep.subr.mxu0 0.0
        %1991 = vmatpush1.xpose.msra.mxu0 0.0
        %1992 = vmatprep.subr.mxu0 0.0
        %1993 = vmatpush1.xpose.msra.mxu0 0.0
        %1994 = vmatprep.subr.mxu0 0.0
        %1995 = vmatpush1.xpose.msra.mxu0 0.0
        %1996 = vmatprep.subr.mxu0 0.0
        %1997 = vmatpush1.xpose.msra.mxu0 0.0
        %1998 = vmatprep.subr.mxu0 0.0
        %1999 = vmatpush1.xpose.msra.mxu0 0.0
        %2000 = vmatprep.subr.mxu0 0.0
        %2001 = vmatpush1.xpose.msra.mxu0 0.0
        %2002 = vmatprep.subr.mxu0 0.0
        %2003 = vmatpush1.xpose.msra.mxu0 0.0
        %2004 = vmatprep.subr.mxu0 0.0
        %2005 = vmatpush1.xpose.msra.mxu0 0.0
        %2006 = vmatprep.subr.mxu0 0.0
        %2007 = vmatpush1.xpose.msra.mxu0 0.0
        %2008 = vmatprep.subr.mxu0 0.0
        %2009 = vmatpush1.xpose.msra.mxu0 0.0
        %2010 = vmatprep.subr.mxu0 0.0
        %2011 = vmatpush1.xpose.msra.mxu0 0.0
        %2012 = vmatprep.subr.mxu0 0.0
        %2013 = vmatpush1.xpose.msra.mxu0 0.0
        %2014 = vmatprep.subr.mxu0 0.0
        %2015 = vmatpush1.xpose.msra.mxu0 0.0
        %2016 = vmatprep.subr.mxu0 0.0
        %2017 = vmatpush1.xpose.msra.mxu0 0.0
        %2018 = vmatprep.subr.mxu0 0.0
        %2019 = vmatpush1.xpose.msra.mxu0 0.0
        %2020 = vmatprep.subr.mxu0 0.0
        %2021 = vmatpush1.xpose.msra.mxu0 0.0
        %2022 = vmatprep.subr.mxu0 0.0
        %2023 = vmatpush1.xpose.msra.mxu0 0.0
        %2024 = vmatprep.subr.mxu0 0.0
        %2025 = vmatpush1.xpose.msra.mxu0 0.0
        %2026 = vmatprep.subr.mxu0 0.0
        %2027 = vmatpush1.xpose.msra.mxu0 0.0
        %2028 = vmatprep.subr.mxu0 0.0
        %2029 = vmatpush1.xpose.msra.mxu0 0.0
        %2030 = vmatprep.subr.mxu0 0.0
        %2031 = vmatpush1.xpose.msra.mxu0 0.0
        %2032 = vmatprep.subr.mxu0 0.0
        %2033 = vmatpush1.xpose.msra.mxu0 0.0
        %2034 = vmatprep.subr.mxu0 0.0
        %2035 = vmatpush1.xpose.msra.mxu0 0.0
        %2036 = vmatprep.subr.mxu0 0.0
        %2037 = vmatpush1.xpose.msra.mxu0 0.0
        %2038 = vmatprep.subr.mxu0 0.0
        %2039 = vmatpush1.xpose.msra.mxu0 0.0
        %2040 = vmatprep.mubr.f32.mxu0 0.0
        %2041 = vmatmul.mubr.f32.gmra.mrb[0].mxu0 %v1972
        %v2042 = vpop.f32.mrb[0].mxu0
        %v2043 = vadd.f32 0.0, %v2042
        %v2044 = vpop.f32.mrb[0].mxu0
        %2045 = vdwg.mxu0
        %s2046 = scalar_lea.vmem %s338, 32 [#allocation7]
        %2047 = vst.msk [vmem:[%s2046] sm:$0xf] %vm1412, %v1504
        %2048 = vst.msk [vmem:[%s2046 + $0x4] sm:$0xf] %vm1412, %v1581
        %2049 = vst.msk [vmem:[%s2046 + $0x8] sm:$0xf] %vm1412, %v1658
        %2050 = vst.msk [vmem:[%s2046 + $0xc] sm:$0xf] %vm1412, %v1735
        %2051 = vst.msk [vmem:[%s2046 + $0x10] sm:$0xf] %vm1412, %v1812
        %2052 = vst.msk [vmem:[%s2046 + $0x14] sm:$0xf] %vm1412, %v1889
        %2053 = vst.msk [vmem:[%s2046 + $0x18] sm:$0xf] %vm1412, %v1966
        %2054 = vst.msk [vmem:[%s2046 + $0x1c] sm:$0xf] %vm1412, %v2043
        %s2055 = sand.u32 %s195, 1
        %s2056 = scalar_lea.sflag [#allocation4], %s2055
        %s2057 = sand.u32 %s195, 1
        %s2058 = smul.addr %s2057, 64
        %s2059 = scalar_lea.vmem [#allocation7], %s2058
        // Predicated region
        $region57: #{tpu_custom_call.1} parent=47 // pred_check
          %p2060 = pneg %p205
        $region58: #{tpu_custom_call.1} parent=47 // pred_check_branch
          %2062 = sbr.rel (%p2060) target = $region60
        $region59: #{tpu_custom_call.1} parent=47 // pred_region
          %s2064 = ssub.s32 1024, 1024
          %2065 = vsyncadd %s2056, %s2064
          %s2066 = smul.addr %s25, 16
          %s2067 = smul.addr %s2066, 64
          %s2068 = scalar_lea.hbm %s7, %s2067
          %s2069 = sshll.u32 %s2059, 4
          %s2070 = int_to_ptr.vmem [resolvable:$true] %s2069
          %2075 = dma.vmem_to_hbm [thread:$0]  %s2070, 1024, %s2068, %s2056, 64, 64, 4
        $region60: #{tpu_custom_call.1} parent=47 // pred_fallthru
          _
      $region48: #{tpu_custom_call.1} parent=5 // pred_fallthru
        _
      %p2076 = scmp.le.s32.totalorder 2, %s20
      // Predicated region
      $region61: #{tpu_custom_call.1} parent=5 // pred_check
        %p2077 = pneg %p2076
      $region62: #{tpu_custom_call.1} parent=5 // pred_check_branch
        %2079 = sbr.rel (%p2077) target = $region64
      $region63: #{tpu_custom_call.1} parent=5 // pred_region
        %s2080 = ssub.s32 %s20, 2
        // Predicated region
        $region65: #{tpu_custom_call.1} parent=63 // pred_check
          %p2081 = pneg %p211
        $region66: #{tpu_custom_call.1} parent=63 // pred_check_branch
          %2083 = sbr.rel (%p2081) target = $region68
        $region67: #{tpu_custom_call.1} parent=63 // pred_region
          %s2084 = sand.u32 %s196, 1
          %s2085 = scalar_lea.sflag [#allocation4], %s2084
          %s2086 = sand.u32 %s196, 1
          %s2087 = smul.addr %s2086, 64
          %s2088 = scalar_lea.vmem [#allocation7], %s2087
          %2089 = dma.done %s2085, 1024
        $region68: #{tpu_custom_call.1} parent=63 // pred_fallthru
          _
      $region64: #{tpu_custom_call.1} parent=5 // pred_fallthru
        _
    $region6: #{tpu_custom_call.1} parent=1 // loop_footer
      %s24 = sadd.s32 1, %s20
    $region7: #{tpu_custom_call.1} parent=1 // loop_footer_branch
      %19 = sbr.rel target = $region3
    $region8: #{tpu_custom_call.1} parent=1 // loop_exit
      _
    %2090 = vsyncpa [#allocation3], 1
    %s2091 = scalar_lea.sflag [#allocation3], 1
    %2092 = vsyncpa %s2091, 1
    %2093 = vsyncpa [#allocation6], 1
    %2094 = vsyncpa [#allocation4], 1
    %s2095 = scalar_lea.sflag [#allocation4], 1
    %2096 = vsyncpa %s2095, 1

</llo_original>
